<compile_context>
chip_gen: v5e
topology: v5e:2x2
jax: 0.10.0
libtpu: 0.0.40
codegen_flags: <defaults>
</compile_context>

<pallas_src>
import functools
import math

import jax
import jax.numpy as jnp
from jax.experimental import pallas as pl
from jax.experimental.pallas import tpu as pltpu

EPS = 1e-5  # nn.LayerNorm default eps


def _vmem_limit_bytes():
    # ~3/4 of physical VMEM: v5e/v6e (128 MiB) -> 96 MiB, v7x (64 MiB) -> 48 MiB.
    try:
        cap = int(pltpu.get_tpu_info().vmem_capacity_bytes)
    except Exception:
        cap = 64 * 1024 * 1024
    return int(cap * 3 // 4)


# ----------------------------- Pallas kernels -----------------------------

def _layer_norm(x, gamma, beta):
    mu = jnp.mean(x, axis=-1, keepdims=True)
    xc = x - mu
    var = jnp.mean(xc * xc, axis=-1, keepdims=True)
    return xc * jax.lax.rsqrt(var + EPS) * gamma + beta


def transformer_layers_kernel(x_ref, maskb_ref,
                              ln1g_ref, ln1b_ref,
                              wqkv_ref, bqkv_ref,
                              wo_ref, bo_ref,
                              ln2g_ref, ln2b_ref,
                              w1_ref, b1_ref, w2_ref, b2_ref,
                              o_ref,
                              *, num_heads):
    l = pl.program_id(1)
    BB, S, D = o_ref.shape
    H = num_heads
    Dh = D // H
    M = BB * S
    scale = 1.0 / math.sqrt(Dh)

    # First layer for this batch block: seed the residual stream from input.
    # o_ref's block index is constant across the layer axis, so it stays
    # VMEM-resident and acts as the residual carry (no scratch needed).
    @pl.when(l == 0)
    def _():
        o_ref[...] = x_ref[...]

    x = o_ref[...].reshape(M, D)        # (BB*S, D) f32 residual stream
    mask = maskb_ref[...]               # (BB, S, S) additive bias (-1e9 masked)

    # ---- pre-LN + fused QKV projection (single MXU pass over (D, 3D)) ----
    h = _layer_norm(x, ln1g_ref[...], ln1b_ref[...])
    qkv = jnp.dot(h.astype(jnp.bfloat16), wqkv_ref[...],
                  preferred_element_type=jnp.float32) + bqkv_ref[...]   # (M, 3D)

    # ---- attention: per-head lane slice + layout-free (M,Dh)->(BB,S,Dh)
    #      reshape (free when S % 8 == 0), single-batch-dim einsums ----
    ctx_parts = []
    for hd in range(H):
        q = qkv[:, 0 * D + hd * Dh: 0 * D + (hd + 1) * Dh]
        k = qkv[:, 1 * D + hd * Dh: 1 * D + (hd + 1) * Dh]
        v = qkv[:, 2 * D + hd * Dh: 2 * D + (hd + 1) * Dh]
        q = q.reshape(BB, S, Dh).astype(jnp.bfloat16)
        k = k.reshape(BB, S, Dh).astype(jnp.bfloat16)
        v = v.reshape(BB, S, Dh).astype(jnp.bfloat16)
        s = jnp.einsum('bqd,bkd->bqk', q, k,
                       preferred_element_type=jnp.float32) * scale + mask
        s = s - jnp.max(s, axis=-1, keepdims=True)
        p = jnp.exp(s)
        p = p * pl.reciprocal(jnp.sum(p, axis=-1, keepdims=True), approx=True)
        c = jnp.einsum('bqk,bkd->bqd', p.astype(jnp.bfloat16), v,
                       preferred_element_type=jnp.float32)              # (BB,S,Dh)
        ctx_parts.append(c.reshape(M, Dh))
    ctx = jnp.concatenate(ctx_parts, axis=-1)                           # (M, D)

    attn = jnp.dot(ctx.astype(jnp.bfloat16), wo_ref[...],
                   preferred_element_type=jnp.float32) + bo_ref[...]
    x = x + attn                        # residual add

    # ---- pre-LN + feed forward ----
    h2 = _layer_norm(x, ln2g_ref[...], ln2b_ref[...])
    f1 = jnp.maximum(
        jnp.dot(h2.astype(jnp.bfloat16), w1_ref[...],
                preferred_element_type=jnp.float32) + b1_ref[...], 0.0)
    f2 = jnp.dot(f1.astype(jnp.bfloat16), w2_ref[...],
                 preferred_element_type=jnp.float32) + b2_ref[...]
    x = x + f2                          # residual add

    o_ref[...] = x.reshape(BB, S, D)    # carry residual stream to next layer


def output_proj_kernel(x_ref, w_ref, b_ref, o_ref):
    o_ref[...] = jnp.dot(x_ref[...].astype(jnp.bfloat16), w_ref[...],
                         preferred_element_type=jnp.float32) + b_ref[...]


# ----------------------------- wrappers -----------------------------

def transformer_layers(x, mask_bias, prep, num_heads):
    B, S, D = x.shape
    L = prep['wqkv'].shape[0]
    assert D % num_heads == 0

    # Fold batch into the compute block (fills the MXU M dim and streams each
    # layer's weights once per batch block).  Keep >=2 batch blocks when
    # possible so both v7x TensorCores get work via the "parallel" axis.
    nb = 2 if (B % 2 == 0 and B >= 2) else 1
    BB = B // nb

    def wspec(shape):
        zeros = (0,) * len(shape)
        # stacked weights: array shape (L, *shape); pick layer l, resident full matrix
        return pl.BlockSpec((None,) + shape, lambda b, l: (l,) + zeros)

    F = prep['w1'].shape[-1]
    in_specs = [
        pl.BlockSpec((BB, S, D), lambda b, l: (b, 0, 0)),        # x (read at l==0)
        pl.BlockSpec((BB, S, S), lambda b, l: (b, 0, 0)),        # mask bias
        wspec((1, D)), wspec((1, D)),                            # ln1 gamma, beta
        wspec((D, 3 * D)), wspec((1, 3 * D)),                    # wqkv, bqkv
        wspec((D, D)), wspec((1, D)),                            # wo, bo
        wspec((1, D)), wspec((1, D)),                            # ln2 gamma, beta
        wspec((D, F)), wspec((1, F)),                            # w1, b1
        wspec((F, D)), wspec((1, D)),                            # w2, b2
    ]
    out_spec = pl.BlockSpec((BB, S, D), lambda b, l: (b, 0, 0))  # residual carry

    kernel = functools.partial(transformer_layers_kernel, num_heads=num_heads)
    return pl.pallas_call(
        kernel,
        out_shape=jax.ShapeDtypeStruct((B, S, D), jnp.float32),
        grid=(nb, L),
        in_specs=in_specs,
        out_specs=out_spec,
        compiler_params=pltpu.CompilerParams(
            dimension_semantics=("parallel", "arbitrary"),
            vmem_limit_bytes=_vmem_limit_bytes()),
    )(x, mask_bias,
      prep['ln1_g'], prep['ln1_b'],
      prep['wqkv'], prep['bqkv'],
      prep['wo'], prep['bo'],
      prep['ln2_g'], prep['ln2_b'],
      prep['w1'], prep['b1'],
      prep['w2'], prep['b2'])


def output_projection(x2d, w_pad_bf16, b_pad):
    M, D = x2d.shape
    Vp = w_pad_bf16.shape[1]
    tm = M if M <= 256 else 256          # fold B*S into the matmul M dim
    tv = Vp if Vp <= 512 else 512        # lane-dense vocab tiles
    grid = (pl.cdiv(M, tm), pl.cdiv(Vp, tv))
    return pl.pallas_call(
        output_proj_kernel,
        out_shape=jax.ShapeDtypeStruct((M, Vp), jnp.float32),
        grid=grid,
        in_specs=[pl.BlockSpec((tm, D), lambda i, j: (i, 0)),
                  pl.BlockSpec((D, tv), lambda i, j: (0, j)),
                  pl.BlockSpec((1, tv), lambda i, j: (0, j))],
        out_specs=pl.BlockSpec((tm, tv), lambda i, j: (i, j)),
        compiler_params=pltpu.CompilerParams(
            dimension_semantics=("parallel", "parallel"),
            vmem_limit_bytes=_vmem_limit_bytes()),
    )(x2d, w_pad_bf16, b_pad)


# ----------------------------- model glue -----------------------------

def sinusoidal_pos_encoding(max_len, d):
    pos = jnp.arange(max_len, dtype=jnp.float32)[:, None]
    div = jnp.exp(jnp.arange(0, d, 2, dtype=jnp.float32) * (-math.log(10000.0) / d))
    pe = jnp.zeros((max_len, d), jnp.float32)
    pe = pe.at[:, 0::2].set(jnp.sin(pos * div))
    pe = pe.at[:, 1::2].set(jnp.cos(pos * div))
    return pe


def init_params(key, vocab, D, num_heads, F, L, max_len):
    def w(k, shape, scale=0.02):
        return (scale * jax.random.normal(k, shape)).astype(jnp.float32)

    keys = jax.random.split(key, 8)
    return {
        'embed': w(keys[0], (vocab, D)),
        'pos_enc': sinusoidal_pos_encoding(max_len, D),
        'w_out': w(keys[1], (D, vocab)),
        'b_out': jnp.zeros((1, vocab), jnp.float32),
        # per-layer weights stacked along a leading L axis (f32 master copies)
        'ln1_g': jnp.ones((L, 1, D), jnp.float32),
        'ln1_b': jnp.zeros((L, 1, D), jnp.float32),
        'wq': w(keys[2], (L, D, D)), 'bq': jnp.zeros((L, 1, D), jnp.float32),
        'wk': w(keys[3], (L, D, D)), 'bk': jnp.zeros((L, 1, D), jnp.float32),
        'wv': w(keys[4], (L, D, D)), 'bv': jnp.zeros((L, 1, D), jnp.float32),
        'wo': w(keys[5], (L, D, D)), 'bo': jnp.zeros((L, 1, D), jnp.float32),
        'ln2_g': jnp.ones((L, 1, D), jnp.float32),
        'ln2_b': jnp.zeros((L, 1, D), jnp.float32),
        'w1': w(keys[6], (L, D, F)), 'b1': jnp.zeros((L, 1, F), jnp.float32),
        'w2': w(keys[7], (L, F, D)), 'b2': jnp.zeros((L, 1, D), jnp.float32),
    }


def prepare_params(params):
    """One-time parameter prep: fused-QKV concat, bf16 casts, vocab padding."""
    D = params['embed'].shape[1]
    V = params['w_out'].shape[1]
    Vp = ((V + 127) // 128) * 128
    w_out_p = jnp.zeros((D, Vp), jnp.bfloat16).at[:, :V].set(
        params['w_out'].astype(jnp.bfloat16))
    b_out_p = jnp.zeros((1, Vp), jnp.float32).at[:, :V].set(params['b_out'])
    return {
        'embed': params['embed'],
        'pos_enc': params['pos_enc'],
        'ln1_g': params['ln1_g'], 'ln1_b': params['ln1_b'],
        'wqkv': jnp.concatenate([params['wq'], params['wk'], params['wv']],
                                axis=-1).astype(jnp.bfloat16),      # (L, D, 3D)
        'bqkv': jnp.concatenate([params['bq'], params['bk'], params['bv']],
                                axis=-1),                           # (L, 1, 3D)
        'wo': params['wo'].astype(jnp.bfloat16), 'bo': params['bo'],
        'ln2_g': params['ln2_g'], 'ln2_b': params['ln2_b'],
        'w1': params['w1'].astype(jnp.bfloat16), 'b1': params['b1'],
        'w2': params['w2'].astype(jnp.bfloat16), 'b2': params['b2'],
        'w_out_p': w_out_p, 'b_out_p': b_out_p,
    }


def model_forward(tokens, attention_mask, prep, num_heads, vocab):
    B, S = tokens.shape
    D = prep['embed'].shape[1]

    tok_emb = jnp.take(prep['embed'], tokens, axis=0)               # (B, S, D)
    x = tok_emb + prep['pos_enc'][:S][None]
    # TODO(synk): nn.Dropout is identity at inference; omitted.
    mask_bias = jnp.where(attention_mask, -1e9, 0.0).astype(jnp.float32)

    x = transformer_layers(x, mask_bias, prep, num_heads)           # (B, S, D)

    logits_p = output_projection(x.reshape(B * S, D),
                                 prep['w_out_p'], prep['b_out_p'])  # (B*S, Vp)
    return logits_p.reshape(B, S, -1)[:, :, :vocab]


# ----------------------------- pure-JAX reference -----------------------------

def model_forward_ref(tokens, attention_mask, params, num_heads):
    B, S = tokens.shape
    D = params['embed'].shape[1]
    Dh = D // num_heads
    L = params['wq'].shape[0]

    def ln(y, g, b):
        mu = y.mean(-1, keepdims=True)
        yc = y - mu
        var = (yc * yc).mean(-1, keepdims=True)
        return yc * jax.lax.rsqrt(var + EPS) * g + b

    x = jnp.take(params['embed'], tokens, axis=0) + params['pos_enc'][:S][None]
    mask_bias = jnp.where(attention_mask, -1e9, 0.0).astype(jnp.float32)
    for l in range(L):
        h = ln(x, params['ln1_g'][l], params['ln1_b'][l])
        q = (h @ params['wq'][l] + params['bq'][l]).reshape(B, S, num_heads, Dh).transpose(0, 2, 1, 3)
        k = (h @ params['wk'][l] + params['bk'][l]).reshape(B, S, num_heads, Dh).transpose(0, 2, 1, 3)
        v = (h @ params['wv'][l] + params['bv'][l]).reshape(B, S, num_heads, Dh).transpose(0, 2, 1, 3)
        s = jnp.einsum('bhqd,bhkd->bhqk', q, k) / math.sqrt(Dh) + mask_bias[:, None]
        a = jax.nn.softmax(s, axis=-1)
        ctx = jnp.einsum('bhqk,bhkd->bhqd', a, v).transpose(0, 2, 1, 3).reshape(B, S, D)
        x = x + ctx @ params['wo'][l] + params['bo'][l]
        h2 = ln(x, params['ln2_g'][l], params['ln2_b'][l])
        f = jax.nn.relu(h2 @ params['w1'][l] + params['b1'][l]) @ params['w2'][l] + params['b2'][l]
        x = x + f
    return x @ params['w_out'] + params['b_out']


# ----------------------------- main -----------------------------

if __name__ == "__main__":
    B, S, D = 2, 8, 32
    num_heads, F, L = 4, 64, 2
    vocab, max_len = 50, 16

    key = jax.random.PRNGKey(0)
    kp, kt = jax.random.split(key)
    params = init_params(kp, vocab, D, num_heads, F, L, max_len)
    prep = prepare_params(params)         # one-time: concat/cast/pad weights

    tokens = jax.random.randint(kt, (B, S), 0, vocab, dtype=jnp.int32)
    # causal mask: True -> masked (future positions)
    attn_mask = jnp.triu(jnp.ones((S, S), bool), k=1)[None].repeat(B, axis=0)

    logits = jax.block_until_ready(
        model_forward(tokens, attn_mask, prep, num_heads, vocab))
    ref = jax.block_until_ready(
        model_forward_ref(tokens, attn_mask, params, num_heads))

    max_err = float(jnp.max(jnp.abs(logits - ref)))
    assert logits.shape == (B, S, vocab), logits.shape
    # bf16 MXU operands (f32 accumulation) + approx reciprocal vs f32 reference
    assert max_err < 2e-2, f"max abs error {max_err}"

    print("KERNEL_OK")
</pallas_src>

<mosaic_0001>
module attributes {stable_mosaic.version = 11 : i64} {
  func.func @transformer_layers_kernel(%arg0: i32, %arg1: i32, %arg2: memref<1x8x32xf32, #tpu.memory_space<vmem>>, %arg3: memref<1x8x8xf32, #tpu.memory_space<vmem>>, %arg4: memref<1x1x32xf32, #tpu.memory_space<vmem>>, %arg5: memref<1x1x32xf32, #tpu.memory_space<vmem>>, %arg6: memref<1x32x96xbf16, #tpu.memory_space<vmem>>, %arg7: memref<1x1x96xf32, #tpu.memory_space<vmem>>, %arg8: memref<1x32x32xbf16, #tpu.memory_space<vmem>>, %arg9: memref<1x1x32xf32, #tpu.memory_space<vmem>>, %arg10: memref<1x1x32xf32, #tpu.memory_space<vmem>>, %arg11: memref<1x1x32xf32, #tpu.memory_space<vmem>>, %arg12: memref<1x32x64xbf16, #tpu.memory_space<vmem>>, %arg13: memref<1x1x64xf32, #tpu.memory_space<vmem>>, %arg14: memref<1x64x32xbf16, #tpu.memory_space<vmem>>, %arg15: memref<1x1x32xf32, #tpu.memory_space<vmem>>, %arg16: memref<1x8x32xf32, #tpu.memory_space<vmem>>) attributes {dimension_semantics = [#tpu.dimension_semantics<parallel>, #tpu.dimension_semantics<arbitrary>], iteration_bounds = array<i64: 2, 2>, scalar_prefetch = 0 : i64, scratch_operands = 0 : i64, tpu.core_type = #tpu.core_type<tc>, window_params = [{transform_indices = @transform_0, window_bounds = array<i64: 1, 8, 32>}, {transform_indices = @transform_1, window_bounds = array<i64: 1, 8, 8>}, {transform_indices = @transform_2, window_bounds = array<i64: 1, 1, 32>}, {transform_indices = @transform_3, window_bounds = array<i64: 1, 1, 32>}, {transform_indices = @transform_4, window_bounds = array<i64: 1, 32, 96>}, {transform_indices = @transform_5, window_bounds = array<i64: 1, 1, 96>}, {transform_indices = @transform_6, window_bounds = array<i64: 1, 32, 32>}, {transform_indices = @transform_7, window_bounds = array<i64: 1, 1, 32>}, {transform_indices = @transform_8, window_bounds = array<i64: 1, 1, 32>}, {transform_indices = @transform_9, window_bounds = array<i64: 1, 1, 32>}, {transform_indices = @transform_10, window_bounds = array<i64: 1, 32, 64>}, {transform_indices = @transform_11, window_bounds = array<i64: 1, 1, 64>}, {transform_indices = @transform_12, window_bounds = array<i64: 1, 64, 32>}, {transform_indices = @transform_13, window_bounds = array<i64: 1, 1, 32>}, {transform_indices = @transform_14, window_bounds = array<i64: 1, 8, 32>}]} {
    %c0_i32 = arith.constant 0 : i32
    %0 = arith.cmpi eq, %arg1, %c0_i32 : i32
    %1 = arith.extui %0 : i1 to i32
    %c0_i32_0 = arith.constant 0 : i32
    %2 = arith.cmpi ne, %1, %c0_i32_0 : i32
    scf.if %2 {
      %c0_79 = arith.constant 0 : index
      %c0_80 = arith.constant 0 : index
      %c0_81 = arith.constant 0 : index
      %197 = vector.load %arg2[%c0_79, %c0_80, %c0_81] : memref<1x8x32xf32, #tpu.memory_space<vmem>>, vector<1x8x32xf32>
      %c0_82 = arith.constant 0 : index
      %c0_83 = arith.constant 0 : index
      %c0_84 = arith.constant 0 : index
      %198 = vector.load %arg16[%c0_82, %c0_83, %c0_84] : memref<1x8x32xf32, #tpu.memory_space<vmem>>, vector<1x8x32xf32>
      tpu.vector_store %arg16[%c0_82, %c0_83, %c0_84], %197 {strides = array<i32>} : memref<1x8x32xf32, #tpu.memory_space<vmem>>, vector<1x8x32xf32>,
    } else {
    }
    %c0 = arith.constant 0 : index
    %c0_1 = arith.constant 0 : index
    %c0_2 = arith.constant 0 : index
    %3 = vector.load %arg16[%c0, %c0_1, %c0_2] : memref<1x8x32xf32, #tpu.memory_space<vmem>>, vector<1x8x32xf32>
    %4 = vector.shape_cast %3 : vector<1x8x32xf32> to vector<8x32xf32>
    %c0_3 = arith.constant 0 : index
    %c0_4 = arith.constant 0 : index
    %c0_5 = arith.constant 0 : index
    %5 = vector.load %arg3[%c0_3, %c0_4, %c0_5] : memref<1x8x8xf32, #tpu.memory_space<vmem>>, vector<1x8x8xf32>
    %c0_6 = arith.constant 0 : index
    %c0_7 = arith.constant 0 : index
    %c0_8 = arith.constant 0 : index
    %6 = vector.load %arg4[%c0_6, %c0_7, %c0_8] : memref<1x1x32xf32, #tpu.memory_space<vmem>>, vector<1x1x32xf32>
    %7 = vector.shape_cast %6 : vector<1x1x32xf32> to vector<1x32xf32>
    %c0_9 = arith.constant 0 : index
    %c0_10 = arith.constant 0 : index
    %c0_11 = arith.constant 0 : index
    %8 = vector.load %arg5[%c0_9, %c0_10, %c0_11] : memref<1x1x32xf32, #tpu.memory_space<vmem>>, vector<1x1x32xf32>
    %9 = vector.shape_cast %8 : vector<1x1x32xf32> to vector<1x32xf32>
    %cst = arith.constant dense<0.000000e+00> : vector<8xf32>
    %10 = vector.multi_reduction <add>, %4, %cst [1] : vector<8x32xf32> to vector<8xf32>
    %11 = vector.shape_cast %10 : vector<8xf32> to vector<8x1xf32>
    %cst_12 = arith.constant 3.200000e+01 : f32
    %12 = vector.broadcast %cst_12 : f32 to vector<8x1xf32>
    %13 = arith.divf %11, %12 : vector<8x1xf32>
    %14 = vector.broadcast %13 : vector<8x1xf32> to vector<8x32xf32>
    %15 = arith.subf %4, %14 : vector<8x32xf32>
    %16 = arith.mulf %15, %15 : vector<8x32xf32>
    %cst_13 = arith.constant dense<0.000000e+00> : vector<8xf32>
    %17 = vector.multi_reduction <add>, %16, %cst_13 [1] : vector<8x32xf32> to vector<8xf32>
    %18 = vector.shape_cast %17 : vector<8xf32> to vector<8x1xf32>
    %cst_14 = arith.constant 3.200000e+01 : f32
    %19 = vector.broadcast %cst_14 : f32 to vector<8x1xf32>
    %20 = arith.divf %18, %19 : vector<8x1xf32>
    %cst_15 = arith.constant 9.99999974E-6 : f32
    %21 = vector.broadcast %cst_15 : f32 to vector<8x1xf32>
    %22 = arith.addf %20, %21 : vector<8x1xf32>
    %23 = math.rsqrt %22 : vector<8x1xf32>
    %24 = vector.broadcast %23 : vector<8x1xf32> to vector<8x32xf32>
    %25 = arith.mulf %15, %24 : vector<8x32xf32>
    %26 = vector.broadcast %7 : vector<1x32xf32> to vector<8x32xf32>
    %27 = arith.mulf %25, %26 : vector<8x32xf32>
    %28 = vector.broadcast %9 : vector<1x32xf32> to vector<8x32xf32>
    %29 = arith.addf %27, %28 : vector<8x32xf32>
    %30 = arith.truncf %29 : vector<8x32xf32> to vector<8x32xbf16>
    %c0_16 = arith.constant 0 : index
    %c0_17 = arith.constant 0 : index
    %c0_18 = arith.constant 0 : index
    %31 = vector.load %arg6[%c0_16, %c0_17, %c0_18] : memref<1x32x96xbf16, #tpu.memory_space<vmem>>, vector<1x32x96xbf16>
    %32 = vector.shape_cast %31 : vector<1x32x96xbf16> to vector<32x96xbf16>
    %cst_19 = arith.constant dense<0.000000e+00> : vector<8x96xf32>
    %33 = tpu.matmul %30, %32, %cst_19 {dimension_numbers = #tpu.dot_dimension_numbers<[1], [0], [0], [1], [0, 0, 1, 1], [], []>} : vector<8x32xbf16>, vector<32x96xbf16>, vector<8x96xf32> -> vector<8x96xf32>
    %c0_20 = arith.constant 0 : index
    %c0_21 = arith.constant 0 : index
    %c0_22 = arith.constant 0 : index
    %34 = vector.load %arg7[%c0_20, %c0_21, %c0_22] : memref<1x1x96xf32, #tpu.memory_space<vmem>>, vector<1x1x96xf32>
    %35 = vector.shape_cast %34 : vector<1x1x96xf32> to vector<1x96xf32>
    %36 = vector.broadcast %35 : vector<1x96xf32> to vector<8x96xf32>
    %37 = arith.addf %33, %36 : vector<8x96xf32>
    %38 = vector.extract_strided_slice %37 {offsets = [0, 0], sizes = [8, 8], strides = [1, 1]} : vector<8x96xf32> to vector<8x8xf32>
    %39 = vector.extract_strided_slice %37 {offsets = [0, 32], sizes = [8, 8], strides = [1, 1]} : vector<8x96xf32> to vector<8x8xf32>
    %40 = vector.extract_strided_slice %37 {offsets = [0, 64], sizes = [8, 8], strides = [1, 1]} : vector<8x96xf32> to vector<8x8xf32>
    %41 = vector.shape_cast %38 : vector<8x8xf32> to vector<1x8x8xf32>
    %42 = arith.truncf %41 : vector<1x8x8xf32> to vector<1x8x8xbf16>
    %43 = vector.shape_cast %39 : vector<8x8xf32> to vector<1x8x8xf32>
    %44 = arith.truncf %43 : vector<1x8x8xf32> to vector<1x8x8xbf16>
    %45 = vector.shape_cast %40 : vector<8x8xf32> to vector<1x8x8xf32>
    %46 = arith.truncf %45 : vector<1x8x8xf32> to vector<1x8x8xbf16>
    "tpu.trace_start"() <{level = 10 : i32, message = "bqd,bkd->bqk"}> : () -> ()
    %cst_23 = arith.constant dense<0.000000e+00> : vector<1x8x8xf32>
    %47 = tpu.matmul %42, %44, %cst_23 {dimension_numbers = #tpu.dot_dimension_numbers<[2], [2], [1], [1], [0, 0, 0, 1, 1, 1], [0], [0]>} : vector<1x8x8xbf16>, vector<1x8x8xbf16>, vector<1x8x8xf32> -> vector<1x8x8xf32>
    "tpu.trace_stop"() : () -> ()
    %cst_24 = arith.constant 0.353553385 : f32
    %48 = vector.broadcast %cst_24 : f32 to vector<1x8x8xf32>
    %49 = arith.mulf %47, %48 : vector<1x8x8xf32>
    %50 = arith.addf %49, %5 : vector<1x8x8xf32>
    %cst_25 = arith.constant dense<0xFF800000> : vector<1x8xf32>
    %51 = vector.multi_reduction <maximumf>, %50, %cst_25 [2] : vector<1x8x8xf32> to vector<1x8xf32>
    %52 = vector.shape_cast %51 : vector<1x8xf32> to vector<1x8x1xf32>
    %53 = vector.broadcast %52 : vector<1x8x1xf32> to vector<1x8x8xf32>
    %54 = arith.subf %50, %53 : vector<1x8x8xf32>
    %55 = math.exp %54 : vector<1x8x8xf32>
    %cst_26 = arith.constant dense<0.000000e+00> : vector<1x8xf32>
    %56 = vector.multi_reduction <add>, %55, %cst_26 [2] : vector<1x8x8xf32> to vector<1x8xf32>
    %57 = vector.shape_cast %56 : vector<1x8xf32> to vector<1x8x1xf32>
    %58 = tpu.reciprocal %57 {approx = true} : vector<1x8x1xf32> -> vector<1x8x1xf32>
    %59 = vector.broadcast %58 : vector<1x8x1xf32> to vector<1x8x8xf32>
    %60 = arith.mulf %55, %59 : vector<1x8x8xf32>
    %61 = arith.truncf %60 : vector<1x8x8xf32> to vector<1x8x8xbf16>
    "tpu.trace_start"() <{level = 10 : i32, message = "bqk,bkd->bqd"}> : () -> ()
    %cst_27 = arith.constant dense<0.000000e+00> : vector<1x8x8xf32>
    %62 = tpu.matmul %61, %46, %cst_27 {dimension_numbers = #tpu.dot_dimension_numbers<[2], [1], [1], [2], [0, 0, 0, 1, 1, 2], [0], [0]>} : vector<1x8x8xbf16>, vector<1x8x8xbf16>, vector<1x8x8xf32> -> vector<1x8x8xf32>
    "tpu.trace_stop"() : () -> ()
    %63 = vector.shape_cast %62 : vector<1x8x8xf32> to vector<8x8xf32>
    %64 = vector.extract_strided_slice %37 {offsets = [0, 8], sizes = [8, 8], strides = [1, 1]} : vector<8x96xf32> to vector<8x8xf32>
    %65 = vector.extract_strided_slice %37 {offsets = [0, 40], sizes = [8, 8], strides = [1, 1]} : vector<8x96xf32> to vector<8x8xf32>
    %66 = vector.extract_strided_slice %37 {offsets = [0, 72], sizes = [8, 8], strides = [1, 1]} : vector<8x96xf32> to vector<8x8xf32>
    %67 = vector.shape_cast %64 : vector<8x8xf32> to vector<1x8x8xf32>
    %68 = arith.truncf %67 : vector<1x8x8xf32> to vector<1x8x8xbf16>
    %69 = vector.shape_cast %65 : vector<8x8xf32> to vector<1x8x8xf32>
    %70 = arith.truncf %69 : vector<1x8x8xf32> to vector<1x8x8xbf16>
    %71 = vector.shape_cast %66 : vector<8x8xf32> to vector<1x8x8xf32>
    %72 = arith.truncf %71 : vector<1x8x8xf32> to vector<1x8x8xbf16>
    "tpu.trace_start"() <{level = 10 : i32, message = "bqd,bkd->bqk"}> : () -> ()
    %cst_28 = arith.constant dense<0.000000e+00> : vector<1x8x8xf32>
    %73 = tpu.matmul %68, %70, %cst_28 {dimension_numbers = #tpu.dot_dimension_numbers<[2], [2], [1], [1], [0, 0, 0, 1, 1, 1], [0], [0]>} : vector<1x8x8xbf16>, vector<1x8x8xbf16>, vector<1x8x8xf32> -> vector<1x8x8xf32>
    "tpu.trace_stop"() : () -> ()
    %cst_29 = arith.constant 0.353553385 : f32
    %74 = vector.broadcast %cst_29 : f32 to vector<1x8x8xf32>
    %75 = arith.mulf %73, %74 : vector<1x8x8xf32>
    %76 = arith.addf %75, %5 : vector<1x8x8xf32>
    %cst_30 = arith.constant dense<0xFF800000> : vector<1x8xf32>
    %77 = vector.multi_reduction <maximumf>, %76, %cst_30 [2] : vector<1x8x8xf32> to vector<1x8xf32>
    %78 = vector.shape_cast %77 : vector<1x8xf32> to vector<1x8x1xf32>
    %79 = vector.broadcast %78 : vector<1x8x1xf32> to vector<1x8x8xf32>
    %80 = arith.subf %76, %79 : vector<1x8x8xf32>
    %81 = math.exp %80 : vector<1x8x8xf32>
    %cst_31 = arith.constant dense<0.000000e+00> : vector<1x8xf32>
    %82 = vector.multi_reduction <add>, %81, %cst_31 [2] : vector<1x8x8xf32> to vector<1x8xf32>
    %83 = vector.shape_cast %82 : vector<1x8xf32> to vector<1x8x1xf32>
    %84 = tpu.reciprocal %83 {approx = true} : vector<1x8x1xf32> -> vector<1x8x1xf32>
    %85 = vector.broadcast %84 : vector<1x8x1xf32> to vector<1x8x8xf32>
    %86 = arith.mulf %81, %85 : vector<1x8x8xf32>
    %87 = arith.truncf %86 : vector<1x8x8xf32> to vector<1x8x8xbf16>
    "tpu.trace_start"() <{level = 10 : i32, message = "bqk,bkd->bqd"}> : () -> ()
    %cst_32 = arith.constant dense<0.000000e+00> : vector<1x8x8xf32>
    %88 = tpu.matmul %87, %72, %cst_32 {dimension_numbers = #tpu.dot_dimension_numbers<[2], [1], [1], [2], [0, 0, 0, 1, 1, 2], [0], [0]>} : vector<1x8x8xbf16>, vector<1x8x8xbf16>, vector<1x8x8xf32> -> vector<1x8x8xf32>
    "tpu.trace_stop"() : () -> ()
    %89 = vector.shape_cast %88 : vector<1x8x8xf32> to vector<8x8xf32>
    %90 = vector.extract_strided_slice %37 {offsets = [0, 16], sizes = [8, 8], strides = [1, 1]} : vector<8x96xf32> to vector<8x8xf32>
    %91 = vector.extract_strided_slice %37 {offsets = [0, 48], sizes = [8, 8], strides = [1, 1]} : vector<8x96xf32> to vector<8x8xf32>
    %92 = vector.extract_strided_slice %37 {offsets = [0, 80], sizes = [8, 8], strides = [1, 1]} : vector<8x96xf32> to vector<8x8xf32>
    %93 = vector.shape_cast %90 : vector<8x8xf32> to vector<1x8x8xf32>
    %94 = arith.truncf %93 : vector<1x8x8xf32> to vector<1x8x8xbf16>
    %95 = vector.shape_cast %91 : vector<8x8xf32> to vector<1x8x8xf32>
    %96 = arith.truncf %95 : vector<1x8x8xf32> to vector<1x8x8xbf16>
    %97 = vector.shape_cast %92 : vector<8x8xf32> to vector<1x8x8xf32>
    %98 = arith.truncf %97 : vector<1x8x8xf32> to vector<1x8x8xbf16>
    "tpu.trace_start"() <{level = 10 : i32, message = "bqd,bkd->bqk"}> : () -> ()
    %cst_33 = arith.constant dense<0.000000e+00> : vector<1x8x8xf32>
    %99 = tpu.matmul %94, %96, %cst_33 {dimension_numbers = #tpu.dot_dimension_numbers<[2], [2], [1], [1], [0, 0, 0, 1, 1, 1], [0], [0]>} : vector<1x8x8xbf16>, vector<1x8x8xbf16>, vector<1x8x8xf32> -> vector<1x8x8xf32>
    "tpu.trace_stop"() : () -> ()
    %cst_34 = arith.constant 0.353553385 : f32
    %100 = vector.broadcast %cst_34 : f32 to vector<1x8x8xf32>
    %101 = arith.mulf %99, %100 : vector<1x8x8xf32>
    %102 = arith.addf %101, %5 : vector<1x8x8xf32>
    %cst_35 = arith.constant dense<0xFF800000> : vector<1x8xf32>
    %103 = vector.multi_reduction <maximumf>, %102, %cst_35 [2] : vector<1x8x8xf32> to vector<1x8xf32>
    %104 = vector.shape_cast %103 : vector<1x8xf32> to vector<1x8x1xf32>
    %105 = vector.broadcast %104 : vector<1x8x1xf32> to vector<1x8x8xf32>
    %106 = arith.subf %102, %105 : vector<1x8x8xf32>
    %107 = math.exp %106 : vector<1x8x8xf32>
    %cst_36 = arith.constant dense<0.000000e+00> : vector<1x8xf32>
    %108 = vector.multi_reduction <add>, %107, %cst_36 [2] : vector<1x8x8xf32> to vector<1x8xf32>
    %109 = vector.shape_cast %108 : vector<1x8xf32> to vector<1x8x1xf32>
    %110 = tpu.reciprocal %109 {approx = true} : vector<1x8x1xf32> -> vector<1x8x1xf32>
    %111 = vector.broadcast %110 : vector<1x8x1xf32> to vector<1x8x8xf32>
    %112 = arith.mulf %107, %111 : vector<1x8x8xf32>
    %113 = arith.truncf %112 : vector<1x8x8xf32> to vector<1x8x8xbf16>
    "tpu.trace_start"() <{level = 10 : i32, message = "bqk,bkd->bqd"}> : () -> ()
    %cst_37 = arith.constant dense<0.000000e+00> : vector<1x8x8xf32>
    %114 = tpu.matmul %113, %98, %cst_37 {dimension_numbers = #tpu.dot_dimension_numbers<[2], [1], [1], [2], [0, 0, 0, 1, 1, 2], [0], [0]>} : vector<1x8x8xbf16>, vector<1x8x8xbf16>, vector<1x8x8xf32> -> vector<1x8x8xf32>
    "tpu.trace_stop"() : () -> ()
    %115 = vector.shape_cast %114 : vector<1x8x8xf32> to vector<8x8xf32>
    %116 = vector.extract_strided_slice %37 {offsets = [0, 24], sizes = [8, 8], strides = [1, 1]} : vector<8x96xf32> to vector<8x8xf32>
    %117 = vector.extract_strided_slice %37 {offsets = [0, 56], sizes = [8, 8], strides = [1, 1]} : vector<8x96xf32> to vector<8x8xf32>
    %118 = vector.extract_strided_slice %37 {offsets = [0, 88], sizes = [8, 8], strides = [1, 1]} : vector<8x96xf32> to vector<8x8xf32>
    %119 = vector.shape_cast %116 : vector<8x8xf32> to vector<1x8x8xf32>
    %120 = arith.truncf %119 : vector<1x8x8xf32> to vector<1x8x8xbf16>
    %121 = vector.shape_cast %117 : vector<8x8xf32> to vector<1x8x8xf32>
    %122 = arith.truncf %121 : vector<1x8x8xf32> to vector<1x8x8xbf16>
    %123 = vector.shape_cast %118 : vector<8x8xf32> to vector<1x8x8xf32>
    %124 = arith.truncf %123 : vector<1x8x8xf32> to vector<1x8x8xbf16>
    "tpu.trace_start"() <{level = 10 : i32, message = "bqd,bkd->bqk"}> : () -> ()
    %cst_38 = arith.constant dense<0.000000e+00> : vector<1x8x8xf32>
    %125 = tpu.matmul %120, %122, %cst_38 {dimension_numbers = #tpu.dot_dimension_numbers<[2], [2], [1], [1], [0, 0, 0, 1, 1, 1], [0], [0]>} : vector<1x8x8xbf16>, vector<1x8x8xbf16>, vector<1x8x8xf32> -> vector<1x8x8xf32>
    "tpu.trace_stop"() : () -> ()
    %cst_39 = arith.constant 0.353553385 : f32
    %126 = vector.broadcast %cst_39 : f32 to vector<1x8x8xf32>
    %127 = arith.mulf %125, %126 : vector<1x8x8xf32>
    %128 = arith.addf %127, %5 : vector<1x8x8xf32>
    %cst_40 = arith.constant dense<0xFF800000> : vector<1x8xf32>
    %129 = vector.multi_reduction <maximumf>, %128, %cst_40 [2] : vector<1x8x8xf32> to vector<1x8xf32>
    %130 = vector.shape_cast %129 : vector<1x8xf32> to vector<1x8x1xf32>
    %131 = vector.broadcast %130 : vector<1x8x1xf32> to vector<1x8x8xf32>
    %132 = arith.subf %128, %131 : vector<1x8x8xf32>
    %133 = math.exp %132 : vector<1x8x8xf32>
    %cst_41 = arith.constant dense<0.000000e+00> : vector<1x8xf32>
    %134 = vector.multi_reduction <add>, %133, %cst_41 [2] : vector<1x8x8xf32> to vector<1x8xf32>
    %135 = vector.shape_cast %134 : vector<1x8xf32> to vector<1x8x1xf32>
    %136 = tpu.reciprocal %135 {approx = true} : vector<1x8x1xf32> -> vector<1x8x1xf32>
    %137 = vector.broadcast %136 : vector<1x8x1xf32> to vector<1x8x8xf32>
    %138 = arith.mulf %133, %137 : vector<1x8x8xf32>
    %139 = arith.truncf %138 : vector<1x8x8xf32> to vector<1x8x8xbf16>
    "tpu.trace_start"() <{level = 10 : i32, message = "bqk,bkd->bqd"}> : () -> ()
    %cst_42 = arith.constant dense<0.000000e+00> : vector<1x8x8xf32>
    %140 = tpu.matmul %139, %124, %cst_42 {dimension_numbers = #tpu.dot_dimension_numbers<[2], [1], [1], [2], [0, 0, 0, 1, 1, 2], [0], [0]>} : vector<1x8x8xbf16>, vector<1x8x8xbf16>, vector<1x8x8xf32> -> vector<1x8x8xf32>
    "tpu.trace_stop"() : () -> ()
    %141 = vector.shape_cast %140 : vector<1x8x8xf32> to vector<8x8xf32>
    %142 = tpu.concatenate %63, %89, %115, %141 in 1 : vector<8x8xf32>, vector<8x8xf32>, vector<8x8xf32>, vector<8x8xf32> -> vector<8x32xf32>
    %143 = arith.truncf %142 : vector<8x32xf32> to vector<8x32xbf16>
    %c0_43 = arith.constant 0 : index
    %c0_44 = arith.constant 0 : index
    %c0_45 = arith.constant 0 : index
    %144 = vector.load %arg8[%c0_43, %c0_44, %c0_45] : memref<1x32x32xbf16, #tpu.memory_space<vmem>>, vector<1x32x32xbf16>
    %145 = vector.shape_cast %144 : vector<1x32x32xbf16> to vector<32x32xbf16>
    %cst_46 = arith.constant dense<0.000000e+00> : vector<8x32xf32>
    %146 = tpu.matmul %143, %145, %cst_46 {dimension_numbers = #tpu.dot_dimension_numbers<[1], [0], [0], [1], [0, 0, 1, 1], [], []>} : vector<8x32xbf16>, vector<32x32xbf16>, vector<8x32xf32> -> vector<8x32xf32>
    %c0_47 = arith.constant 0 : index
    %c0_48 = arith.constant 0 : index
    %c0_49 = arith.constant 0 : index
    %147 = vector.load %arg9[%c0_47, %c0_48, %c0_49] : memref<1x1x32xf32, #tpu.memory_space<vmem>>, vector<1x1x32xf32>
    %148 = vector.shape_cast %147 : vector<1x1x32xf32> to vector<1x32xf32>
    %149 = vector.broadcast %148 : vector<1x32xf32> to vector<8x32xf32>
    %150 = arith.addf %146, %149 : vector<8x32xf32>
    %151 = arith.addf %4, %150 : vector<8x32xf32>
    %c0_50 = arith.constant 0 : index
    %c0_51 = arith.constant 0 : index
    %c0_52 = arith.constant 0 : index
    %152 = vector.load %arg10[%c0_50, %c0_51, %c0_52] : memref<1x1x32xf32, #tpu.memory_space<vmem>>, vector<1x1x32xf32>
    %153 = vector.shape_cast %152 : vector<1x1x32xf32> to vector<1x32xf32>
    %c0_53 = arith.constant 0 : index
    %c0_54 = arith.constant 0 : index
    %c0_55 = arith.constant 0 : index
    %154 = vector.load %arg11[%c0_53, %c0_54, %c0_55] : memref<1x1x32xf32, #tpu.memory_space<vmem>>, vector<1x1x32xf32>
    %155 = vector.shape_cast %154 : vector<1x1x32xf32> to vector<1x32xf32>
    %cst_56 = arith.constant dense<0.000000e+00> : vector<8xf32>
    %156 = vector.multi_reduction <add>, %151, %cst_56 [1] : vector<8x32xf32> to vector<8xf32>
    %157 = vector.shape_cast %156 : vector<8xf32> to vector<8x1xf32>
    %cst_57 = arith.constant 3.200000e+01 : f32
    %158 = vector.broadcast %cst_57 : f32 to vector<8x1xf32>
    %159 = arith.divf %157, %158 : vector<8x1xf32>
    %160 = vector.broadcast %159 : vector<8x1xf32> to vector<8x32xf32>
    %161 = arith.subf %151, %160 : vector<8x32xf32>
    %162 = arith.mulf %161, %161 : vector<8x32xf32>
    %cst_58 = arith.constant dense<0.000000e+00> : vector<8xf32>
    %163 = vector.multi_reduction <add>, %162, %cst_58 [1] : vector<8x32xf32> to vector<8xf32>
    %164 = vector.shape_cast %163 : vector<8xf32> to vector<8x1xf32>
    %cst_59 = arith.constant 3.200000e+01 : f32
    %165 = vector.broadcast %cst_59 : f32 to vector<8x1xf32>
    %166 = arith.divf %164, %165 : vector<8x1xf32>
    %cst_60 = arith.constant 9.99999974E-6 : f32
    %167 = vector.broadcast %cst_60 : f32 to vector<8x1xf32>
    %168 = arith.addf %166, %167 : vector<8x1xf32>
    %169 = math.rsqrt %168 : vector<8x1xf32>
    %170 = vector.broadcast %169 : vector<8x1xf32> to vector<8x32xf32>
    %171 = arith.mulf %161, %170 : vector<8x32xf32>
    %172 = vector.broadcast %153 : vector<1x32xf32> to vector<8x32xf32>
    %173 = arith.mulf %171, %172 : vector<8x32xf32>
    %174 = vector.broadcast %155 : vector<1x32xf32> to vector<8x32xf32>
    %175 = arith.addf %173, %174 : vector<8x32xf32>
    %176 = arith.truncf %175 : vector<8x32xf32> to vector<8x32xbf16>
    %c0_61 = arith.constant 0 : index
    %c0_62 = arith.constant 0 : index
    %c0_63 = arith.constant 0 : index
    %177 = vector.load %arg12[%c0_61, %c0_62, %c0_63] : memref<1x32x64xbf16, #tpu.memory_space<vmem>>, vector<1x32x64xbf16>
    %178 = vector.shape_cast %177 : vector<1x32x64xbf16> to vector<32x64xbf16>
    %cst_64 = arith.constant dense<0.000000e+00> : vector<8x64xf32>
    %179 = tpu.matmul %176, %178, %cst_64 {dimension_numbers = #tpu.dot_dimension_numbers<[1], [0], [0], [1], [0, 0, 1, 1], [], []>} : vector<8x32xbf16>, vector<32x64xbf16>, vector<8x64xf32> -> vector<8x64xf32>
    %c0_65 = arith.constant 0 : index
    %c0_66 = arith.constant 0 : index
    %c0_67 = arith.constant 0 : index
    %180 = vector.load %arg13[%c0_65, %c0_66, %c0_67] : memref<1x1x64xf32, #tpu.memory_space<vmem>>, vector<1x1x64xf32>
    %181 = vector.shape_cast %180 : vector<1x1x64xf32> to vector<1x64xf32>
    %182 = vector.broadcast %181 : vector<1x64xf32> to vector<8x64xf32>
    %183 = arith.addf %179, %182 : vector<8x64xf32>
    %cst_68 = arith.constant 0.000000e+00 : f32
    %184 = vector.broadcast %cst_68 : f32 to vector<8x64xf32>
    %185 = arith.maximumf %183, %184 : vector<8x64xf32>
    %186 = arith.truncf %185 : vector<8x64xf32> to vector<8x64xbf16>
    %c0_69 = arith.constant 0 : index
    %c0_70 = arith.constant 0 : index
    %c0_71 = arith.constant 0 : index
    %187 = vector.load %arg14[%c0_69, %c0_70, %c0_71] : memref<1x64x32xbf16, #tpu.memory_space<vmem>>, vector<1x64x32xbf16>
    %188 = vector.shape_cast %187 : vector<1x64x32xbf16> to vector<64x32xbf16>
    %cst_72 = arith.constant dense<0.000000e+00> : vector<8x32xf32>
    %189 = tpu.matmul %186, %188, %cst_72 {dimension_numbers = #tpu.dot_dimension_numbers<[1], [0], [0], [1], [0, 0, 1, 1], [], []>} : vector<8x64xbf16>, vector<64x32xbf16>, vector<8x32xf32> -> vector<8x32xf32>
    %c0_73 = arith.constant 0 : index
    %c0_74 = arith.constant 0 : index
    %c0_75 = arith.constant 0 : index
    %190 = vector.load %arg15[%c0_73, %c0_74, %c0_75] : memref<1x1x32xf32, #tpu.memory_space<vmem>>, vector<1x1x32xf32>
    %191 = vector.shape_cast %190 : vector<1x1x32xf32> to vector<1x32xf32>
    %192 = vector.broadcast %191 : vector<1x32xf32> to vector<8x32xf32>
    %193 = arith.addf %189, %192 : vector<8x32xf32>
    %194 = arith.addf %151, %193 : vector<8x32xf32>
    %195 = vector.shape_cast %194 : vector<8x32xf32> to vector<1x8x32xf32>
    %c0_76 = arith.constant 0 : index
    %c0_77 = arith.constant 0 : index
    %c0_78 = arith.constant 0 : index
    %196 = vector.load %arg16[%c0_76, %c0_77, %c0_78] : memref<1x8x32xf32, #tpu.memory_space<vmem>>, vector<1x8x32xf32>
    tpu.vector_store %arg16[%c0_76, %c0_77, %c0_78], %195 {strides = array<i32>} : memref<1x8x32xf32, #tpu.memory_space<vmem>>, vector<1x8x32xf32>,
    return
  }
  func.func @transform_0(%arg0: i32, %arg1: i32) -> (i32, i32, i32) {
    %c0_i32 = arith.constant 0 : i32
    %c0_i32_0 = arith.constant 0 : i32
    %c0_i32_1 = arith.constant 0 : i32
    return %arg0, %c0_i32, %c0_i32_0 : i32, i32, i32
  }
  func.func @transform_1(%arg0: i32, %arg1: i32) -> (i32, i32, i32) {
    %c0_i32 = arith.constant 0 : i32
    %c0_i32_0 = arith.constant 0 : i32
    %c0_i32_1 = arith.constant 0 : i32
    return %arg0, %c0_i32, %c0_i32_0 : i32, i32, i32
  }
  func.func @transform_2(%arg0: i32, %arg1: i32) -> (i32, i32, i32) {
    %c0_i32 = arith.constant 0 : i32
    %c0_i32_0 = arith.constant 0 : i32
    %c0_i32_1 = arith.constant 0 : i32
    return %arg1, %c0_i32, %c0_i32_0 : i32, i32, i32
  }
  func.func @transform_3(%arg0: i32, %arg1: i32) -> (i32, i32, i32) {
    %c0_i32 = arith.constant 0 : i32
    %c0_i32_0 = arith.constant 0 : i32
    %c0_i32_1 = arith.constant 0 : i32
    return %arg1, %c0_i32, %c0_i32_0 : i32, i32, i32
  }
  func.func @transform_4(%arg0: i32, %arg1: i32) -> (i32, i32, i32) {
    %c0_i32 = arith.constant 0 : i32
    %c0_i32_0 = arith.constant 0 : i32
    %c0_i32_1 = arith.constant 0 : i32
    return %arg1, %c0_i32, %c0_i32_0 : i32, i32, i32
  }
  func.func @transform_5(%arg0: i32, %arg1: i32) -> (i32, i32, i32) {
    %c0_i32 = arith.constant 0 : i32
    %c0_i32_0 = arith.constant 0 : i32
    %c0_i32_1 = arith.constant 0 : i32
    return %arg1, %c0_i32, %c0_i32_0 : i32, i32, i32
  }
  func.func @transform_6(%arg0: i32, %arg1: i32) -> (i32, i32, i32) {
    %c0_i32 = arith.constant 0 : i32
    %c0_i32_0 = arith.constant 0 : i32
    %c0_i32_1 = arith.constant 0 : i32
    return %arg1, %c0_i32, %c0_i32_0 : i32, i32, i32
  }
  func.func @transform_7(%arg0: i32, %arg1: i32) -> (i32, i32, i32) {
    %c0_i32 = arith.constant 0 : i32
    %c0_i32_0 = arith.constant 0 : i32
    %c0_i32_1 = arith.constant 0 : i32
    return %arg1, %c0_i32, %c0_i32_0 : i32, i32, i32
  }
  func.func @transform_8(%arg0: i32, %arg1: i32) -> (i32, i32, i32) {
    %c0_i32 = arith.constant 0 : i32
    %c0_i32_0 = arith.constant 0 : i32
    %c0_i32_1 = arith.constant 0 : i32
    return %arg1, %c0_i32, %c0_i32_0 : i32, i32, i32
  }
  func.func @transform_9(%arg0: i32, %arg1: i32) -> (i32, i32, i32) {
    %c0_i32 = arith.constant 0 : i32
    %c0_i32_0 = arith.constant 0 : i32
    %c0_i32_1 = arith.constant 0 : i32
    return %arg1, %c0_i32, %c0_i32_0 : i32, i32, i32
  }
  func.func @transform_10(%arg0: i32, %arg1: i32) -> (i32, i32, i32) {
    %c0_i32 = arith.constant 0 : i32
    %c0_i32_0 = arith.constant 0 : i32
    %c0_i32_1 = arith.constant 0 : i32
    return %arg1, %c0_i32, %c0_i32_0 : i32, i32, i32
  }
  func.func @transform_11(%arg0: i32, %arg1: i32) -> (i32, i32, i32) {
    %c0_i32 = arith.constant 0 : i32
    %c0_i32_0 = arith.constant 0 : i32
    %c0_i32_1 = arith.constant 0 : i32
    return %arg1, %c0_i32, %c0_i32_0 : i32, i32, i32
  }
  func.func @transform_12(%arg0: i32, %arg1: i32) -> (i32, i32, i32) {
    %c0_i32 = arith.constant 0 : i32
    %c0_i32_0 = arith.constant 0 : i32
    %c0_i32_1 = arith.constant 0 : i32
    return %arg1, %c0_i32, %c0_i32_0 : i32, i32, i32
  }
  func.func @transform_13(%arg0: i32, %arg1: i32) -> (i32, i32, i32) {
    %c0_i32 = arith.constant 0 : i32
    %c0_i32_0 = arith.constant 0 : i32
    %c0_i32_1 = arith.constant 0 : i32
    return %arg1, %c0_i32, %c0_i32_0 : i32, i32, i32
  }
  func.func @transform_14(%arg0: i32, %arg1: i32) -> (i32, i32, i32) {
    %c0_i32 = arith.constant 0 : i32
    %c0_i32_0 = arith.constant 0 : i32
    %c0_i32_1 = arith.constant 0 : i32
    return %arg0, %c0_i32, %c0_i32_0 : i32, i32, i32
  }
}

</mosaic_0001>

<llo_original>
// kernel: tpu_custom_call.1
$region0: #{tpu_custom_call.1}
  #allocation0 [shape = 'u32[]', space=smem, size = 0x4, offset = 0x4, fixed_abs, tag = 'smem constant byte address 0x4 - core index']
  #allocation1 [shape = 'u32[72,128]{1,0:T(1,128)}', space=vmem, size = 0x9000, scoped, tag = 'internal scratch']
  %s0 = inlined_call_operand.hbm [shape: f32[2,8,32], index: 0, kind: input, shape index: {}]
  %s1 = inlined_call_operand.hbm [shape: f32[2,8,8], index: 1, kind: input, shape index: {}]
  %s2 = inlined_call_operand.hbm [shape: f32[2,1,32], index: 2, kind: input, shape index: {}]
  %s3 = inlined_call_operand.hbm [shape: f32[2,1,32], index: 3, kind: input, shape index: {}]
  %s4 = inlined_call_operand.vmem [shape: bf16[2,32,96], index: 4, kind: input, shape index: {}]
  %s5 = inlined_call_operand.vmem [shape: f32[2,1,96], index: 5, kind: input, shape index: {}]
  %s6 = inlined_call_operand.vmem [shape: bf16[2,32,32], index: 6, kind: input, shape index: {}]
  %s7 = inlined_call_operand.vmem [shape: f32[2,1,32], index: 7, kind: input, shape index: {}]
  %s8 = inlined_call_operand.vmem [shape: f32[2,1,32], index: 8, kind: input, shape index: {}]
  %s9 = inlined_call_operand.hbm [shape: f32[2,1,32], index: 9, kind: input, shape index: {}]
  %s10 = inlined_call_operand.vmem [shape: bf16[2,32,64], index: 10, kind: input, shape index: {}]
  %s11 = inlined_call_operand.vmem [shape: f32[2,1,64], index: 11, kind: input, shape index: {}]
  %s12 = inlined_call_operand.vmem [shape: bf16[2,64,32], index: 12, kind: input, shape index: {}]
  %s13 = inlined_call_operand.vmem [shape: f32[2,1,32], index: 13, kind: input, shape index: {}]
  %s14 = inlined_call_operand.hbm [shape: f32[2,8,32], index: 14, kind: output, shape index: {}]
  %s15 = sld [smem:[#allocation0]]
  $region113: #{tpu_custom_call.1} parent=0
    _
  %s17 = ssub.s32 1, %s15
  %s18 = scalar_select 0, %s17, %s15
  $region1: #{tpu_custom_call.1} parent=0
    #allocation2 [shape = 'u8[8192]{0}', space=vmem, size = 0x2000, scoped, tag = 'input window, operand 0']
    #allocation3 [shape = 's32[2]{0}', space=sflag, size = 0x8, scoped, tag = 'scoped memory for tpu_custom_call.1']
    #allocation4 [shape = 's32[2]{0}', space=sflag, size = 0x8, scoped, tag = 'scoped memory for tpu_custom_call.1']
    #allocation5 [shape = 'u8[8192]{0}', space=vmem, size = 0x2000, scoped, tag = 'input window, operand 1']
    #allocation6 [shape = 's32[2]{0}', space=sflag, size = 0x8, scoped, tag = 'scoped memory for tpu_custom_call.1']
    #allocation7 [shape = 'u8[1024]{0}', space=vmem, size = 0x400, scoped, tag = 'input window, operand 2']
    #allocation8 [shape = 'u8[1024]{0}', space=vmem, size = 0x400, scoped, tag = 'input window, operand 3']
    #allocation9 [shape = 's32[2]{0}', space=sflag, size = 0x8, scoped, tag = 'scoped memory for tpu_custom_call.1']
    #allocation10 [shape = 'u8[1024]{0}', space=vmem, size = 0x400, scoped, tag = 'input window, operand 9']
    #allocation11 [shape = 'u8[8192]{0}', space=vmem, size = 0x2000, scoped, tag = 'output window, operand 0']
    %19 = vsyncpa [#allocation3], 0
    %s20 = scalar_lea.sflag [#allocation3], 1
    %21 = vsyncpa %s20, 0
    %22 = vsyncpa [#allocation6], 0
    %s23 = scalar_lea.sflag [#allocation6], 1
    %24 = vsyncpa %s23, 0
    %25 = vsyncpa [#allocation9], 0
    %s26 = scalar_lea.sflag [#allocation9], 1
    %27 = vsyncpa %s26, 0
    %28 = vsyncpa [#allocation4], 0
    %s29 = scalar_lea.sflag [#allocation4], 1
    %30 = vsyncpa %s29, 0
    loop: start=0, step=1, limit=6
    $region2: #{tpu_custom_call.1} parent=1 // loop_pre_header
      _
    $region3: #{tpu_custom_call.1} parent=1 // loop_header
      %s32 = sphi 0, %s36
      %p33 = scmp.ge.s32.totalorder %s32, 6
      %s39 = sphi 0, %s51
      %s40 = sphi 0, %s47
      %s41 = sphi 0, %s39
      %s42 = sphi 0, %s40
      %s43 = sphi 0, %s41
      %s44 = sphi 0, %s42
      %s54 = sphi 0, %s56
      %s57 = sphi 0, %s54
      %s58 = sphi 0, %s57
      %s74 = sphi 0, %s58
      %s80 = sphi 0, %s82
      %s83 = sphi 0, %s80
      %s84 = sphi 0, %s83
      %s100 = sphi 0, %s84
      %s106 = sphi 0, %s108
      %s109 = sphi 0, %s106
      %s110 = sphi 0, %s109
      %s126 = sphi 0, %s110
      %s132 = sphi 0, %s134
      %s135 = sphi 0, %s132
      %s136 = sphi 0, %s135
      %s152 = sphi 0, %s136
      %s158 = sphi 0, %s160
      %s161 = sphi 0, %s158
      %s162 = sphi 0, %s161
      %s178 = sphi 0, %s162
      %s184 = sphi 0, %s186
      %s187 = sphi 0, %s184
      %s188 = sphi 0, %s187
      %s204 = sphi 0, %s188
      %s210 = sphi 0, %s212
      %s213 = sphi 0, %s210
      %s214 = sphi 0, %s213
      %s230 = sphi 0, %s214
      %s236 = sphi 0, %s238
      %s239 = sphi 0, %s236
      %s240 = sphi 0, %s239
      %s256 = sphi 0, %s240
      %s262 = sphi 0, %s264
      %s265 = sphi 0, %s262
      %s266 = sphi 0, %s265
      %s282 = sphi 0, %s266
      %s288 = sphi 0, %s290
      %s291 = sphi 0, %s288
      %s292 = sphi 0, %s291
      %s308 = sphi 0, %s292
      %s314 = sphi 0, %s316
      %s317 = sphi 0, %s314
      %s318 = sphi 0, %s317
      %s334 = sphi 0, %s318
      %s340 = sphi 0, %s342
      %s343 = sphi 0, %s340
      %s344 = sphi 0, %s343
      %s360 = sphi 0, %s344
      %s366 = sphi 0, %s368
      %s369 = sphi 0, %s366
      %s370 = sphi 0, %s369
      %s386 = sphi 0, %s370
      %s392 = sphi 0, %s394
      %s395 = sphi 0, %s392
      %s396 = sphi 0, %s395
      %s412 = sphi 0, %s396
      %s418 = sphi 0, %s420
      %s421 = sphi 0, %s418
      %s422 = sphi 0, %s421
      %s438 = sphi 0, %s422
    $region4: #{tpu_custom_call.1} parent=1 // loop_header_branch
      %35 = sbr.rel (%p33) target = $region8
    $region5: #{tpu_custom_call.1} parent=1 // loop_body
      %s37 = ssub.s32 %s32, 1
      %s38 = ssub.s32 %s32, 2
      %s45 = sadd.s32 1, %s40
      %p46 = scmp.ge.s32.totalorder %s45, 2
      %s47 = scalar_select %p46, 0, %s45
      %s48 = sadd.s32 1, %s39
      %s49 = scalar_select %p46, %s48, %s39
      %p50 = scmp.ge.s32.totalorder %s49, 2
      %s51 = scalar_select %p50, 0, %s49
      %s52 = ssub.s32 %s39, %s51
      %p53 = scmp.eq.s32.totalorder %s52, 0
      %s55 = sadd.s32 %s54, 1
      %s56 = scalar_select %p53, %s54, %s55
      %p59 = pneg %p53
      %p60 = scmp.eq.s32.totalorder %s32, 3
      %p61 = por %p59, %p60
      %p62 = scmp.ne.s32.totalorder %s54, %s57
      %p63 = scmp.eq.s32.totalorder %s32, 0
      %p64 = por %p62, %p63
      %p65 = scmp.ne.s32.totalorder %s54, %s57
      %p66 = scmp.eq.s32.totalorder %s37, 3
      %p67 = por %p65, %p66
      %p68 = scmp.ne.s32.totalorder %s57, %s58
      %p69 = scmp.eq.s32.totalorder %s37, 0
      %p70 = por %p68, %p69
      %p71 = scmp.ne.s32.totalorder %s57, %s58
      %p72 = scmp.eq.s32.totalorder %s38, 3
      %p73 = por %p71, %p72
      %p75 = scmp.ne.s32.totalorder %s58, %s74
      %p76 = scmp.eq.s32.totalorder %s38, 0
      %p77 = por %p75, %p76
      %s78 = ssub.s32 %s39, %s51
      %p79 = scmp.eq.s32.totalorder %s78, 0
      %s81 = sadd.s32 %s80, 1
      %s82 = scalar_select %p79, %s80, %s81
      %p85 = pneg %p79
      %p86 = scmp.eq.s32.totalorder %s32, 3
      %p87 = por %p85, %p86
      %p88 = scmp.ne.s32.totalorder %s80, %s83
      %p89 = scmp.eq.s32.totalorder %s32, 0
      %p90 = por %p88, %p89
      %p91 = scmp.ne.s32.totalorder %s80, %s83
      %p92 = scmp.eq.s32.totalorder %s37, 3
      %p93 = por %p91, %p92
      %p94 = scmp.ne.s32.totalorder %s83, %s84
      %p95 = scmp.eq.s32.totalorder %s37, 0
      %p96 = por %p94, %p95
      %p97 = scmp.ne.s32.totalorder %s83, %s84
      %p98 = scmp.eq.s32.totalorder %s38, 3
      %p99 = por %p97, %p98
      %p101 = scmp.ne.s32.totalorder %s84, %s100
      %p102 = scmp.eq.s32.totalorder %s38, 0
      %p103 = por %p101, %p102
      %s104 = ssub.s32 %s40, %s47
      %p105 = scmp.eq.s32.totalorder %s104, 0
      %s107 = sadd.s32 %s106, 1
      %s108 = scalar_select %p105, %s106, %s107
      %p111 = pneg %p105
      %p112 = scmp.eq.s32.totalorder %s32, 3
      %p113 = por %p111, %p112
      %p114 = scmp.ne.s32.totalorder %s106, %s109
      %p115 = scmp.eq.s32.totalorder %s32, 0
      %p116 = por %p114, %p115
      %p117 = scmp.ne.s32.totalorder %s106, %s109
      %p118 = scmp.eq.s32.totalorder %s37, 3
      %p119 = por %p117, %p118
      %p120 = scmp.ne.s32.totalorder %s109, %s110
      %p121 = scmp.eq.s32.totalorder %s37, 0
      %p122 = por %p120, %p121
      %p123 = scmp.ne.s32.totalorder %s109, %s110
      %p124 = scmp.eq.s32.totalorder %s38, 3
      %p125 = por %p123, %p124
      %p127 = scmp.ne.s32.totalorder %s110, %s126
      %p128 = scmp.eq.s32.totalorder %s38, 0
      %p129 = por %p127, %p128
      %s130 = ssub.s32 %s40, %s47
      %p131 = scmp.eq.s32.totalorder %s130, 0
      %s133 = sadd.s32 %s132, 1
      %s134 = scalar_select %p131, %s132, %s133
      %p137 = pneg %p131
      %p138 = scmp.eq.s32.totalorder %s32, 3
      %p139 = por %p137, %p138
      %p140 = scmp.ne.s32.totalorder %s132, %s135
      %p141 = scmp.eq.s32.totalorder %s32, 0
      %p142 = por %p140, %p141
      %p143 = scmp.ne.s32.totalorder %s132, %s135
      %p144 = scmp.eq.s32.totalorder %s37, 3
      %p145 = por %p143, %p144
      %p146 = scmp.ne.s32.totalorder %s135, %s136
      %p147 = scmp.eq.s32.totalorder %s37, 0
      %p148 = por %p146, %p147
      %p149 = scmp.ne.s32.totalorder %s135, %s136
      %p150 = scmp.eq.s32.totalorder %s38, 3
      %p151 = por %p149, %p150
      %p153 = scmp.ne.s32.totalorder %s136, %s152
      %p154 = scmp.eq.s32.totalorder %s38, 0
      %p155 = por %p153, %p154
      %s156 = ssub.s32 %s40, %s47
      %p157 = scmp.eq.s32.totalorder %s156, 0
      %s159 = sadd.s32 %s158, 1
      %s160 = scalar_select %p157, %s158, %s159
      %p163 = pneg %p157
      %p164 = scmp.eq.s32.totalorder %s32, 3
      %p165 = por %p163, %p164
      %p166 = scmp.ne.s32.totalorder %s158, %s161
      %p167 = scmp.eq.s32.totalorder %s32, 0
      %p168 = por %p166, %p167
      %p169 = scmp.ne.s32.totalorder %s158, %s161
      %p170 = scmp.eq.s32.totalorder %s37, 3
      %p171 = por %p169, %p170
      %p172 = scmp.ne.s32.totalorder %s161, %s162
      %p173 = scmp.eq.s32.totalorder %s37, 0
      %p174 = por %p172, %p173
      %p175 = scmp.ne.s32.totalorder %s161, %s162
      %p176 = scmp.eq.s32.totalorder %s38, 3
      %p177 = por %p175, %p176
      %p179 = scmp.ne.s32.totalorder %s162, %s178
      %p180 = scmp.eq.s32.totalorder %s38, 0
      %p181 = por %p179, %p180
      %s182 = ssub.s32 %s40, %s47
      %p183 = scmp.eq.s32.totalorder %s182, 0
      %s185 = sadd.s32 %s184, 1
      %s186 = scalar_select %p183, %s184, %s185
      %p189 = pneg %p183
      %p190 = scmp.eq.s32.totalorder %s32, 3
      %p191 = por %p189, %p190
      %p192 = scmp.ne.s32.totalorder %s184, %s187
      %p193 = scmp.eq.s32.totalorder %s32, 0
      %p194 = por %p192, %p193
      %p195 = scmp.ne.s32.totalorder %s184, %s187
      %p196 = scmp.eq.s32.totalorder %s37, 3
      %p197 = por %p195, %p196
      %p198 = scmp.ne.s32.totalorder %s187, %s188
      %p199 = scmp.eq.s32.totalorder %s37, 0
      %p200 = por %p198, %p199
      %p201 = scmp.ne.s32.totalorder %s187, %s188
      %p202 = scmp.eq.s32.totalorder %s38, 3
      %p203 = por %p201, %p202
      %p205 = scmp.ne.s32.totalorder %s188, %s204
      %p206 = scmp.eq.s32.totalorder %s38, 0
      %p207 = por %p205, %p206
      %s208 = ssub.s32 %s40, %s47
      %p209 = scmp.eq.s32.totalorder %s208, 0
      %s211 = sadd.s32 %s210, 1
      %s212 = scalar_select %p209, %s210, %s211
      %p215 = pneg %p209
      %p216 = scmp.eq.s32.totalorder %s32, 3
      %p217 = por %p215, %p216
      %p218 = scmp.ne.s32.totalorder %s210, %s213
      %p219 = scmp.eq.s32.totalorder %s32, 0
      %p220 = por %p218, %p219
      %p221 = scmp.ne.s32.totalorder %s210, %s213
      %p222 = scmp.eq.s32.totalorder %s37, 3
      %p223 = por %p221, %p222
      %p224 = scmp.ne.s32.totalorder %s213, %s214
      %p225 = scmp.eq.s32.totalorder %s37, 0
      %p226 = por %p224, %p225
      %p227 = scmp.ne.s32.totalorder %s213, %s214
      %p228 = scmp.eq.s32.totalorder %s38, 3
      %p229 = por %p227, %p228
      %p231 = scmp.ne.s32.totalorder %s214, %s230
      %p232 = scmp.eq.s32.totalorder %s38, 0
      %p233 = por %p231, %p232
      %s234 = ssub.s32 %s40, %s47
      %p235 = scmp.eq.s32.totalorder %s234, 0
      %s237 = sadd.s32 %s236, 1
      %s238 = scalar_select %p235, %s236, %s237
      %p241 = pneg %p235
      %p242 = scmp.eq.s32.totalorder %s32, 3
      %p243 = por %p241, %p242
      %p244 = scmp.ne.s32.totalorder %s236, %s239
      %p245 = scmp.eq.s32.totalorder %s32, 0
      %p246 = por %p244, %p245
      %p247 = scmp.ne.s32.totalorder %s236, %s239
      %p248 = scmp.eq.s32.totalorder %s37, 3
      %p249 = por %p247, %p248
      %p250 = scmp.ne.s32.totalorder %s239, %s240
      %p251 = scmp.eq.s32.totalorder %s37, 0
      %p252 = por %p250, %p251
      %p253 = scmp.ne.s32.totalorder %s239, %s240
      %p254 = scmp.eq.s32.totalorder %s38, 3
      %p255 = por %p253, %p254
      %p257 = scmp.ne.s32.totalorder %s240, %s256
      %p258 = scmp.eq.s32.totalorder %s38, 0
      %p259 = por %p257, %p258
      %s260 = ssub.s32 %s40, %s47
      %p261 = scmp.eq.s32.totalorder %s260, 0
      %s263 = sadd.s32 %s262, 1
      %s264 = scalar_select %p261, %s262, %s263
      %p267 = pneg %p261
      %p268 = scmp.eq.s32.totalorder %s32, 3
      %p269 = por %p267, %p268
      %p270 = scmp.ne.s32.totalorder %s262, %s265
      %p271 = scmp.eq.s32.totalorder %s32, 0
      %p272 = por %p270, %p271
      %p273 = scmp.ne.s32.totalorder %s262, %s265
      %p274 = scmp.eq.s32.totalorder %s37, 3
      %p275 = por %p273, %p274
      %p276 = scmp.ne.s32.totalorder %s265, %s266
      %p277 = scmp.eq.s32.totalorder %s37, 0
      %p278 = por %p276, %p277
      %p279 = scmp.ne.s32.totalorder %s265, %s266
      %p280 = scmp.eq.s32.totalorder %s38, 3
      %p281 = por %p279, %p280
      %p283 = scmp.ne.s32.totalorder %s266, %s282
      %p284 = scmp.eq.s32.totalorder %s38, 0
      %p285 = por %p283, %p284
      %s286 = ssub.s32 %s40, %s47
      %p287 = scmp.eq.s32.totalorder %s286, 0
      %s289 = sadd.s32 %s288, 1
      %s290 = scalar_select %p287, %s288, %s289
      %p293 = pneg %p287
      %p294 = scmp.eq.s32.totalorder %s32, 3
      %p295 = por %p293, %p294
      %p296 = scmp.ne.s32.totalorder %s288, %s291
      %p297 = scmp.eq.s32.totalorder %s32, 0
      %p298 = por %p296, %p297
      %p299 = scmp.ne.s32.totalorder %s288, %s291
      %p300 = scmp.eq.s32.totalorder %s37, 3
      %p301 = por %p299, %p300
      %p302 = scmp.ne.s32.totalorder %s291, %s292
      %p303 = scmp.eq.s32.totalorder %s37, 0
      %p304 = por %p302, %p303
      %p305 = scmp.ne.s32.totalorder %s291, %s292
      %p306 = scmp.eq.s32.totalorder %s38, 3
      %p307 = por %p305, %p306
      %p309 = scmp.ne.s32.totalorder %s292, %s308
      %p310 = scmp.eq.s32.totalorder %s38, 0
      %p311 = por %p309, %p310
      %s312 = ssub.s32 %s40, %s47
      %p313 = scmp.eq.s32.totalorder %s312, 0
      %s315 = sadd.s32 %s314, 1
      %s316 = scalar_select %p313, %s314, %s315
      %p319 = pneg %p313
      %p320 = scmp.eq.s32.totalorder %s32, 3
      %p321 = por %p319, %p320
      %p322 = scmp.ne.s32.totalorder %s314, %s317
      %p323 = scmp.eq.s32.totalorder %s32, 0
      %p324 = por %p322, %p323
      %p325 = scmp.ne.s32.totalorder %s314, %s317
      %p326 = scmp.eq.s32.totalorder %s37, 3
      %p327 = por %p325, %p326
      %p328 = scmp.ne.s32.totalorder %s317, %s318
      %p329 = scmp.eq.s32.totalorder %s37, 0
      %p330 = por %p328, %p329
      %p331 = scmp.ne.s32.totalorder %s317, %s318
      %p332 = scmp.eq.s32.totalorder %s38, 3
      %p333 = por %p331, %p332
      %p335 = scmp.ne.s32.totalorder %s318, %s334
      %p336 = scmp.eq.s32.totalorder %s38, 0
      %p337 = por %p335, %p336
      %s338 = ssub.s32 %s40, %s47
      %p339 = scmp.eq.s32.totalorder %s338, 0
      %s341 = sadd.s32 %s340, 1
      %s342 = scalar_select %p339, %s340, %s341
      %p345 = pneg %p339
      %p346 = scmp.eq.s32.totalorder %s32, 3
      %p347 = por %p345, %p346
      %p348 = scmp.ne.s32.totalorder %s340, %s343
      %p349 = scmp.eq.s32.totalorder %s32, 0
      %p350 = por %p348, %p349
      %p351 = scmp.ne.s32.totalorder %s340, %s343
      %p352 = scmp.eq.s32.totalorder %s37, 3
      %p353 = por %p351, %p352
      %p354 = scmp.ne.s32.totalorder %s343, %s344
      %p355 = scmp.eq.s32.totalorder %s37, 0
      %p356 = por %p354, %p355
      %p357 = scmp.ne.s32.totalorder %s343, %s344
      %p358 = scmp.eq.s32.totalorder %s38, 3
      %p359 = por %p357, %p358
      %p361 = scmp.ne.s32.totalorder %s344, %s360
      %p362 = scmp.eq.s32.totalorder %s38, 0
      %p363 = por %p361, %p362
      %s364 = ssub.s32 %s40, %s47
      %p365 = scmp.eq.s32.totalorder %s364, 0
      %s367 = sadd.s32 %s366, 1
      %s368 = scalar_select %p365, %s366, %s367
      %p371 = pneg %p365
      %p372 = scmp.eq.s32.totalorder %s32, 3
      %p373 = por %p371, %p372
      %p374 = scmp.ne.s32.totalorder %s366, %s369
      %p375 = scmp.eq.s32.totalorder %s32, 0
      %p376 = por %p374, %p375
      %p377 = scmp.ne.s32.totalorder %s366, %s369
      %p378 = scmp.eq.s32.totalorder %s37, 3
      %p379 = por %p377, %p378
      %p380 = scmp.ne.s32.totalorder %s369, %s370
      %p381 = scmp.eq.s32.totalorder %s37, 0
      %p382 = por %p380, %p381
      %p383 = scmp.ne.s32.totalorder %s369, %s370
      %p384 = scmp.eq.s32.totalorder %s38, 3
      %p385 = por %p383, %p384
      %p387 = scmp.ne.s32.totalorder %s370, %s386
      %p388 = scmp.eq.s32.totalorder %s38, 0
      %p389 = por %p387, %p388
      %s390 = ssub.s32 %s40, %s47
      %p391 = scmp.eq.s32.totalorder %s390, 0
      %s393 = sadd.s32 %s392, 1
      %s394 = scalar_select %p391, %s392, %s393
      %p397 = pneg %p391
      %p398 = scmp.eq.s32.totalorder %s32, 3
      %p399 = por %p397, %p398
      %p400 = scmp.ne.s32.totalorder %s392, %s395
      %p401 = scmp.eq.s32.totalorder %s32, 0
      %p402 = por %p400, %p401
      %p403 = scmp.ne.s32.totalorder %s392, %s395
      %p404 = scmp.eq.s32.totalorder %s37, 3
      %p405 = por %p403, %p404
      %p406 = scmp.ne.s32.totalorder %s395, %s396
      %p407 = scmp.eq.s32.totalorder %s37, 0
      %p408 = por %p406, %p407
      %p409 = scmp.ne.s32.totalorder %s395, %s396
      %p410 = scmp.eq.s32.totalorder %s38, 3
      %p411 = por %p409, %p410
      %p413 = scmp.ne.s32.totalorder %s396, %s412
      %p414 = scmp.eq.s32.totalorder %s38, 0
      %p415 = por %p413, %p414
      %s416 = ssub.s32 %s39, %s51
      %p417 = scmp.eq.s32.totalorder %s416, 0
      %s419 = sadd.s32 %s418, 1
      %s420 = scalar_select %p417, %s418, %s419
      %p423 = pneg %p417
      %p424 = scmp.eq.s32.totalorder %s32, 3
      %p425 = por %p423, %p424
      %p426 = scmp.ne.s32.totalorder %s418, %s421
      %p427 = scmp.eq.s32.totalorder %s32, 0
      %p428 = por %p426, %p427
      %p429 = scmp.ne.s32.totalorder %s418, %s421
      %p430 = scmp.eq.s32.totalorder %s37, 3
      %p431 = por %p429, %p430
      %p432 = scmp.ne.s32.totalorder %s421, %s422
      %p433 = scmp.eq.s32.totalorder %s37, 0
      %p434 = por %p432, %p433
      %p435 = scmp.ne.s32.totalorder %s421, %s422
      %p436 = scmp.eq.s32.totalorder %s38, 3
      %p437 = por %p435, %p436
      %p439 = scmp.ne.s32.totalorder %s422, %s438
      %p440 = scmp.eq.s32.totalorder %s38, 0
      %p441 = por %p439, %p440
      %p442 = scmp.le.s32.totalorder 1, %s32
      %p443 = scmp.lt.s32.totalorder %s32, 5
      %p444 = pnand %p442, %p443
      %p445 = pneg %p444
      // Predicated region
      $region9: #{tpu_custom_call.1} parent=5 // pred_check
        _
      $region10: #{tpu_custom_call.1} parent=5 // pred_check_branch
        %447 = sbr.rel (%p444) target = $region12
      $region11: #{tpu_custom_call.1} parent=5 // pred_region
        %s448 = ssub.s32 %s32, 1
      $region12: #{tpu_custom_call.1} parent=5 // pred_fallthru
        _
      %p449 = scmp.lt.s32.totalorder %s32, 4
      // Predicated region
      $region13: #{tpu_custom_call.1} parent=5 // pred_check
        %p450 = pneg %p449
      $region14: #{tpu_custom_call.1} parent=5 // pred_check_branch
        %452 = sbr.rel (%p450) target = $region16
      $region15: #{tpu_custom_call.1} parent=5 // pred_region
        // Predicated region
        $region17: #{tpu_custom_call.1} parent=15 // pred_check
          %p453 = pneg %p64
        $region18: #{tpu_custom_call.1} parent=15 // pred_check_branch
          %455 = sbr.rel (%p453) target = $region20
        $region19: #{tpu_custom_call.1} parent=15 // pred_region
          %s456 = sand.u32 %s54, 1
          %s457 = scalar_lea.sflag [#allocation3], %s456
          %s458 = sand.u32 %s54, 1
          %s459 = smul.addr %s458, 8
          %s460 = scalar_lea.vmem [#allocation2], %s459
          %462 = vsyncadd %s457, 0
          %s463 = smul.addr %s39, 8
          %s464 = scalar_lea.hbm %s0, %s463
          %s466 = sshll.u32 %s464, 4
          %s467 = int_to_ptr.hbm [resolvable:$true] %s466
          %s468 = sshll.u32 %s460, 4
          %s469 = int_to_ptr.vmem [resolvable:$true] %s468
          %471 = dma.hbm_to_vmem [thread:$0]  %s467, 128, %s469, %s457
        $region20: #{tpu_custom_call.1} parent=15 // pred_fallthru
          _
        // Predicated region
        $region21: #{tpu_custom_call.1} parent=15 // pred_check
          %p472 = pneg %p90
        $region22: #{tpu_custom_call.1} parent=15 // pred_check_branch
          %474 = sbr.rel (%p472) target = $region24
        $region23: #{tpu_custom_call.1} parent=15 // pred_region
          %s475 = sand.u32 %s32, 1
          %s476 = scalar_lea.sflag [#allocation6], %s475
          %s477 = sand.u32 %s80, 1
          %s478 = smul.addr %s477, 8
          %s479 = scalar_lea.vmem [#allocation5], %s478
          %481 = vsyncadd %s476, 0
          %s482 = smul.addr %s39, 8
          %s483 = scalar_lea.hbm %s1, %s482
          %s485 = sshll.u32 %s483, 4
          %s486 = int_to_ptr.hbm [resolvable:$true] %s485
          %s487 = sshll.u32 %s479, 4
          %s488 = int_to_ptr.vmem [resolvable:$true] %s487
          %490 = dma.hbm_to_vmem [thread:$0]  %s486, 128, %s488, %s476
        $region24: #{tpu_custom_call.1} parent=15 // pred_fallthru
          _
        // Predicated region
        $region25: #{tpu_custom_call.1} parent=15 // pred_check
          %p491 = pneg %p116
        $region26: #{tpu_custom_call.1} parent=15 // pred_check_branch
          %493 = sbr.rel (%p491) target = $region28
        $region27: #{tpu_custom_call.1} parent=15 // pred_region
          %s494 = sand.u32 %s32, 1
          %s495 = scalar_lea.sflag [#allocation6], %s494
          %s496 = sand.u32 %s106, 1
          %s497 = scalar_lea.vmem [#allocation7], %s496
          %499 = vsyncadd %s495, 0
          %s500 = scalar_lea.hbm %s2, %s40
          %s502 = sshll.u32 %s500, 4
          %s503 = int_to_ptr.hbm [resolvable:$true] %s502
          %s504 = sshll.u32 %s497, 4
          %s505 = int_to_ptr.vmem [resolvable:$true] %s504
          %507 = dma.hbm_to_vmem [thread:$0]  %s503, 16, %s505, %s495
        $region28: #{tpu_custom_call.1} parent=15 // pred_fallthru
          _
        // Predicated region
        $region29: #{tpu_custom_call.1} parent=15 // pred_check
          %p508 = pneg %p142
        $region30: #{tpu_custom_call.1} parent=15 // pred_check_branch
          %510 = sbr.rel (%p508) target = $region32
        $region31: #{tpu_custom_call.1} parent=15 // pred_region
          %s511 = sand.u32 %s32, 1
          %s512 = scalar_lea.sflag [#allocation9], %s511
          %s513 = sand.u32 %s132, 1
          %s514 = scalar_lea.vmem [#allocation8], %s513
          %516 = vsyncadd %s512, 0
          %s517 = scalar_lea.hbm %s3, %s40
          %s519 = sshll.u32 %s517, 4
          %s520 = int_to_ptr.hbm [resolvable:$true] %s519
          %s521 = sshll.u32 %s514, 4
          %s522 = int_to_ptr.vmem [resolvable:$true] %s521
          %524 = dma.hbm_to_vmem [thread:$0]  %s520, 16, %s522, %s512
        $region32: #{tpu_custom_call.1} parent=15 // pred_fallthru
          _
        // Predicated region
        $region33: #{tpu_custom_call.1} parent=15 // pred_check
          %p525 = pneg %p168
        $region34: #{tpu_custom_call.1} parent=15 // pred_check_branch
          %527 = sbr.rel (%p525) target = $region36
        $region35: #{tpu_custom_call.1} parent=15 // pred_region
          %p528 = scmp.lt.s32.totalorder %s40, 1
          %s529 = scalar_select %p528, %s40, 1
          %s530 = smul.addr %s529, 4
          %s531 = smul.addr %s530, 4
          %s532 = scalar_lea.vmem %s4, %s531
        $region36: #{tpu_custom_call.1} parent=15 // pred_fallthru
          _
        // Predicated region
        $region37: #{tpu_custom_call.1} parent=15 // pred_check
          %p533 = pneg %p194
        $region38: #{tpu_custom_call.1} parent=15 // pred_check_branch
          %535 = sbr.rel (%p533) target = $region40
        $region39: #{tpu_custom_call.1} parent=15 // pred_region
          %p536 = scmp.lt.s32.totalorder %s40, 1
          %s537 = scalar_select %p536, %s40, 1
          %s538 = scalar_lea.vmem %s5, %s537
        $region40: #{tpu_custom_call.1} parent=15 // pred_fallthru
          _
        // Predicated region
        $region41: #{tpu_custom_call.1} parent=15 // pred_check
          %p539 = pneg %p220
        $region42: #{tpu_custom_call.1} parent=15 // pred_check_branch
          %541 = sbr.rel (%p539) target = $region44
        $region43: #{tpu_custom_call.1} parent=15 // pred_region
          %p542 = scmp.lt.s32.totalorder %s40, 1
          %s543 = scalar_select %p542, %s40, 1
          %s544 = smul.addr %s543, 4
          %s545 = smul.addr %s544, 4
          %s546 = scalar_lea.vmem %s6, %s545
        $region44: #{tpu_custom_call.1} parent=15 // pred_fallthru
          _
        // Predicated region
        $region45: #{tpu_custom_call.1} parent=15 // pred_check
          %p547 = pneg %p246
        $region46: #{tpu_custom_call.1} parent=15 // pred_check_branch
          %549 = sbr.rel (%p547) target = $region48
        $region47: #{tpu_custom_call.1} parent=15 // pred_region
          %p550 = scmp.lt.s32.totalorder %s40, 1
          %s551 = scalar_select %p550, %s40, 1
          %s552 = scalar_lea.vmem %s7, %s551
        $region48: #{tpu_custom_call.1} parent=15 // pred_fallthru
          _
        // Predicated region
        $region49: #{tpu_custom_call.1} parent=15 // pred_check
          %p553 = pneg %p272
        $region50: #{tpu_custom_call.1} parent=15 // pred_check_branch
          %555 = sbr.rel (%p553) target = $region52
        $region51: #{tpu_custom_call.1} parent=15 // pred_region
          %p556 = scmp.lt.s32.totalorder %s40, 1
          %s557 = scalar_select %p556, %s40, 1
          %s558 = scalar_lea.vmem %s8, %s557
        $region52: #{tpu_custom_call.1} parent=15 // pred_fallthru
          _
        // Predicated region
        $region53: #{tpu_custom_call.1} parent=15 // pred_check
          %p559 = pneg %p298
        $region54: #{tpu_custom_call.1} parent=15 // pred_check_branch
          %561 = sbr.rel (%p559) target = $region56
        $region55: #{tpu_custom_call.1} parent=15 // pred_region
          %s562 = sand.u32 %s32, 1
          %s563 = scalar_lea.sflag [#allocation9], %s562
          %s564 = sand.u32 %s288, 1
          %s565 = scalar_lea.vmem [#allocation10], %s564
          %567 = vsyncadd %s563, 0
          %s568 = scalar_lea.hbm %s9, %s40
          %s570 = sshll.u32 %s568, 4
          %s571 = int_to_ptr.hbm [resolvable:$true] %s570
          %s572 = sshll.u32 %s565, 4
          %s573 = int_to_ptr.vmem [resolvable:$true] %s572
          %575 = dma.hbm_to_vmem [thread:$0]  %s571, 16, %s573, %s563
        $region56: #{tpu_custom_call.1} parent=15 // pred_fallthru
          _
        // Predicated region
        $region57: #{tpu_custom_call.1} parent=15 // pred_check
          %p576 = pneg %p324
        $region58: #{tpu_custom_call.1} parent=15 // pred_check_branch
          %578 = sbr.rel (%p576) target = $region60
        $region59: #{tpu_custom_call.1} parent=15 // pred_region
          %p579 = scmp.lt.s32.totalorder %s40, 1
          %s580 = scalar_select %p579, %s40, 1
          %s581 = smul.addr %s580, 4
          %s582 = smul.addr %s581, 4
          %s583 = scalar_lea.vmem %s10, %s582
        $region60: #{tpu_custom_call.1} parent=15 // pred_fallthru
          _
        // Predicated region
        $region61: #{tpu_custom_call.1} parent=15 // pred_check
          %p584 = pneg %p350
        $region62: #{tpu_custom_call.1} parent=15 // pred_check_branch
          %586 = sbr.rel (%p584) target = $region64
        $region63: #{tpu_custom_call.1} parent=15 // pred_region
          %p587 = scmp.lt.s32.totalorder %s40, 1
          %s588 = scalar_select %p587, %s40, 1
          %s589 = scalar_lea.vmem %s11, %s588
        $region64: #{tpu_custom_call.1} parent=15 // pred_fallthru
          _
        // Predicated region
        $region65: #{tpu_custom_call.1} parent=15 // pred_check
          %p590 = pneg %p376
        $region66: #{tpu_custom_call.1} parent=15 // pred_check_branch
          %592 = sbr.rel (%p590) target = $region68
        $region67: #{tpu_custom_call.1} parent=15 // pred_region
          %p593 = scmp.lt.s32.totalorder %s40, 1
          %s594 = scalar_select %p593, %s40, 1
          %s595 = smul.addr %s594, 8
          %s596 = smul.addr %s595, 4
          %s597 = scalar_lea.vmem %s12, %s596
        $region68: #{tpu_custom_call.1} parent=15 // pred_fallthru
          _
        // Predicated region
        $region69: #{tpu_custom_call.1} parent=15 // pred_check
          %p598 = pneg %p402
        $region70: #{tpu_custom_call.1} parent=15 // pred_check_branch
          %600 = sbr.rel (%p598) target = $region72
        $region71: #{tpu_custom_call.1} parent=15 // pred_region
          %p601 = scmp.lt.s32.totalorder %s40, 1
          %s602 = scalar_select %p601, %s40, 1
          %s603 = scalar_lea.vmem %s13, %s602
        $region72: #{tpu_custom_call.1} parent=15 // pred_fallthru
          _
      $region16: #{tpu_custom_call.1} parent=5 // pred_fallthru
        _
      %p604 = scmp.le.s32.totalorder 1, %s32
      %p605 = scmp.lt.s32.totalorder %s32, 5
      %p606 = pnand %p604, %p605
      %p607 = pneg %p606
      // Predicated region
      $region73: #{tpu_custom_call.1} parent=5 // pred_check
        _
      $region74: #{tpu_custom_call.1} parent=5 // pred_check_branch
        %609 = sbr.rel (%p606) target = $region76
      $region75: #{tpu_custom_call.1} parent=5 // pred_region
        %s610 = ssub.s32 %s32, 1
        %s611 = sand.u32 %s57, 1
        %s612 = scalar_lea.sflag [#allocation3], %s611
        %s613 = sand.u32 %s57, 1
        %s614 = smul.addr %s613, 8
        %s615 = scalar_lea.vmem [#allocation2], %s614
        // Predicated region
        $region77: #{tpu_custom_call.1} parent=75 // pred_check
          %p616 = pneg %p70
        $region78: #{tpu_custom_call.1} parent=75 // pred_check_branch
          %618 = sbr.rel (%p616) target = $region80
        $region79: #{tpu_custom_call.1} parent=75 // pred_region
          %620 = dma.done %s612, 128
        $region80: #{tpu_custom_call.1} parent=75 // pred_fallthru
          _
        %s621 = sand.u32 %s37, 1
        %s622 = scalar_lea.sflag [#allocation6], %s621
        %s623 = sand.u32 %s83, 1
        %s624 = smul.addr %s623, 8
        %s625 = scalar_lea.vmem [#allocation5], %s624
        // Predicated region
        $region81: #{tpu_custom_call.1} parent=75 // pred_check
          %p626 = pneg %p96
        $region82: #{tpu_custom_call.1} parent=75 // pred_check_branch
          %628 = sbr.rel (%p626) target = $region84
        $region83: #{tpu_custom_call.1} parent=75 // pred_region
          %630 = dma.done %s622, 128
        $region84: #{tpu_custom_call.1} parent=75 // pred_fallthru
          _
        %s631 = sand.u32 %s37, 1
        %s632 = scalar_lea.sflag [#allocation6], %s631
        %s633 = sand.u32 %s109, 1
        %s634 = scalar_lea.vmem [#allocation7], %s633
        // Predicated region
        $region85: #{tpu_custom_call.1} parent=75 // pred_check
          %p635 = pneg %p122
        $region86: #{tpu_custom_call.1} parent=75 // pred_check_branch
          %637 = sbr.rel (%p635) target = $region88
        $region87: #{tpu_custom_call.1} parent=75 // pred_region
          %639 = dma.done %s632, 16
        $region88: #{tpu_custom_call.1} parent=75 // pred_fallthru
          _
        %s640 = sand.u32 %s37, 1
        %s641 = scalar_lea.sflag [#allocation9], %s640
        %s642 = sand.u32 %s135, 1
        %s643 = scalar_lea.vmem [#allocation8], %s642
        // Predicated region
        $region89: #{tpu_custom_call.1} parent=75 // pred_check
          %p644 = pneg %p148
        $region90: #{tpu_custom_call.1} parent=75 // pred_check_branch
          %646 = sbr.rel (%p644) target = $region92
        $region91: #{tpu_custom_call.1} parent=75 // pred_region
          %648 = dma.done %s641, 16
        $region92: #{tpu_custom_call.1} parent=75 // pred_fallthru
          _
        %s649 = sand.u32 %s37, 1
        %s650 = scalar_lea.sflag [#allocation9], %s649
        %s651 = sand.u32 %s291, 1
        %s652 = scalar_lea.vmem [#allocation10], %s651
        // Predicated region
        $region93: #{tpu_custom_call.1} parent=75 // pred_check
          %p653 = pneg %p304
        $region94: #{tpu_custom_call.1} parent=75 // pred_check_branch
          %655 = sbr.rel (%p653) target = $region96
        $region95: #{tpu_custom_call.1} parent=75 // pred_region
          %657 = dma.done %s650, 16
        $region96: #{tpu_custom_call.1} parent=75 // pred_fallthru
          _
        %s658 = sand.u32 %s57, 1
        %s659 = scalar_lea.sflag [#allocation3], %s658
        %s660 = sand.u32 %s57, 1
        %s661 = smul.addr %s660, 8
        %s662 = scalar_lea.vmem [#allocation2], %s661
        %p663 = pneg %p70
        %p664 = pneg %p67
        %s665 = sand.u32 %s37, 1
        %s666 = scalar_lea.sflag [#allocation6], %s665
        %s667 = sand.u32 %s83, 1
        %s668 = smul.addr %s667, 8
        %s669 = scalar_lea.vmem [#allocation5], %s668
        %p670 = pneg %p96
        %p671 = pneg %p93
        %s672 = sand.u32 %s37, 1
        %s673 = scalar_lea.sflag [#allocation6], %s672
        %s674 = sand.u32 %s109, 1
        %s675 = scalar_lea.vmem [#allocation7], %s674
        %p676 = pneg %p122
        %p677 = pneg %p119
        %s678 = sand.u32 %s37, 1
        %s679 = scalar_lea.sflag [#allocation9], %s678
        %s680 = sand.u32 %s135, 1
        %s681 = scalar_lea.vmem [#allocation8], %s680
        %p682 = pneg %p148
        %p683 = pneg %p145
        %p684 = scmp.lt.s32.totalorder %s42, 1
        %s685 = scalar_select %p684, %s42, 1
        %s686 = smul.addr %s685, 4
        %s687 = smul.addr %s686, 4
        %s688 = scalar_lea.vmem %s4, %s687
        %p689 = pneg %p174
        %p690 = pneg %p171
        %p691 = scmp.lt.s32.totalorder %s42, 1
        %s692 = scalar_select %p691, %s42, 1
        %s693 = scalar_lea.vmem %s5, %s692
        %p694 = pneg %p200
        %p695 = pneg %p197
        %p696 = scmp.lt.s32.totalorder %s42, 1
        %s697 = scalar_select %p696, %s42, 1
        %s698 = smul.addr %s697, 4
        %s699 = smul.addr %s698, 4
        %s700 = scalar_lea.vmem %s6, %s699
        %p701 = pneg %p226
        %p702 = pneg %p223
        %p703 = scmp.lt.s32.totalorder %s42, 1
        %s704 = scalar_select %p703, %s42, 1
        %s705 = scalar_lea.vmem %s7, %s704
        %p706 = pneg %p252
        %p707 = pneg %p249
        %p708 = scmp.lt.s32.totalorder %s42, 1
        %s709 = scalar_select %p708, %s42, 1
        %s710 = scalar_lea.vmem %s8, %s709
        %p711 = pneg %p278
        %p712 = pneg %p275
        %s713 = sand.u32 %s37, 1
        %s714 = scalar_lea.sflag [#allocation9], %s713
        %s715 = sand.u32 %s291, 1
        %s716 = scalar_lea.vmem [#allocation10], %s715
        %p717 = pneg %p304
        %p718 = pneg %p301
        %p719 = scmp.lt.s32.totalorder %s42, 1
        %s720 = scalar_select %p719, %s42, 1
        %s721 = smul.addr %s720, 4
        %s722 = smul.addr %s721, 4
        %s723 = scalar_lea.vmem %s10, %s722
        %p724 = pneg %p330
        %p725 = pneg %p327
        %p726 = scmp.lt.s32.totalorder %s42, 1
        %s727 = scalar_select %p726, %s42, 1
        %s728 = scalar_lea.vmem %s11, %s727
        %p729 = pneg %p356
        %p730 = pneg %p353
        %p731 = scmp.lt.s32.totalorder %s42, 1
        %s732 = scalar_select %p731, %s42, 1
        %s733 = smul.addr %s732, 8
        %s734 = smul.addr %s733, 4
        %s735 = scalar_lea.vmem %s12, %s734
        %p736 = pneg %p382
        %p737 = pneg %p379
        %p738 = scmp.lt.s32.totalorder %s42, 1
        %s739 = scalar_select %p738, %s42, 1
        %s740 = scalar_lea.vmem %s13, %s739
        %p741 = pneg %p408
        %p742 = pneg %p405
        %p743 = pneg %p434
        %p744 = pneg %p431
        %s745 = sand.u32 %s421, 1
        %s746 = scalar_lea.sflag [#allocation4], %s745
        %s747 = sand.u32 %s421, 1
        %s748 = smul.addr %s747, 8
        %s749 = scalar_lea.vmem [#allocation11], %s748
        %p750 = scmp.lt.s32.totalorder %s42, 1
        %s751 = scalar_select %p750, %s42, 1
        %s752 = smul.addr %s751, 4
        %s753 = smul.addr %s752, 4
        %s754 = scalar_lea.vmem %s4, %s753
        %p755 = scmp.lt.s32.totalorder %s42, 1
        %s756 = scalar_select %p755, %s42, 1
        %s757 = scalar_lea.vmem %s5, %s756
        %p758 = scmp.lt.s32.totalorder %s42, 1
        %s759 = scalar_select %p758, %s42, 1
        %s760 = smul.addr %s759, 4
        %s761 = smul.addr %s760, 4
        %s762 = scalar_lea.vmem %s6, %s761
        %p763 = scmp.lt.s32.totalorder %s42, 1
        %s764 = scalar_select %p763, %s42, 1
        %s765 = scalar_lea.vmem %s7, %s764
        %p766 = scmp.lt.s32.totalorder %s42, 1
        %s767 = scalar_select %p766, %s42, 1
        %s768 = scalar_lea.vmem %s8, %s767
        %p769 = scmp.lt.s32.totalorder %s42, 1
        %s770 = scalar_select %p769, %s42, 1
        %s771 = smul.addr %s770, 4
        %s772 = smul.addr %s771, 4
        %s773 = scalar_lea.vmem %s10, %s772
        %p774 = scmp.lt.s32.totalorder %s42, 1
        %s775 = scalar_select %p774, %s42, 1
        %s776 = scalar_lea.vmem %s11, %s775
        %p777 = scmp.lt.s32.totalorder %s42, 1
        %s778 = scalar_select %p777, %s42, 1
        %s779 = smul.addr %s778, 8
        %s780 = smul.addr %s779, 4
        %s781 = scalar_lea.vmem %s12, %s780
        %p782 = scmp.lt.s32.totalorder %s42, 1
        %s783 = scalar_select %p782, %s42, 1
        %s784 = scalar_lea.vmem %s13, %s783
        %p786 = scmp.eq.s32.totalorder %s42, 0
        // Predicated region
        $region97: #{tpu_custom_call.1} parent=75 // pred_check
          %p787 = pneg %p786
        $region98: #{tpu_custom_call.1} parent=75 // pred_check_branch
          %789 = sbr.rel (%p787) target = $region100
        $region99: #{tpu_custom_call.1} parent=75 // pred_region
          %v790 = vld [vmem:[%s615] sm:$0xff]
          %vm791 = vcmask 261120
          %792 = vst.msk [vmem:[%s749] sm:$0xff] %vm791, %v790
        $region100: #{tpu_custom_call.1} parent=75 // pred_fallthru
          _
        %v793 = vld [vmem:[%s749] sm:$0xff]
        %v794 = vld [vmem:[%s625] sm:$0xff]
        %v795 = vld [vmem:[%s634] sm:$0x1]
        %v796 = vld [vmem:[%s643] sm:$0x1]
        %vm797 = vcmask 261120
        %v798 = vsel %vm797, %v793, 0.0
        %799 = vadd.xlane.f32.xlu0 %v798
        %v800 = vpop.xlane.xlu0 %799
        %v801 = vrcp.pop 32.0
        %v802 = vmul.f32 32.0, %v801
        %v803 = vsub.f32 1.0, %v802
        %v804 = vmul.f32 %v801, %v803
        %v805 = vadd.f32 %v801, %v804
        %vm806 = vweird.f32 %v801
        %v807 = vsel %vm806, %v801, %v805
        %v808 = vmul.f32 %v800, %v807
        %v809 = vsub.f32 %v793, %v808
        %v810 = vmul.f32 %v809, %v809
        %v811 = vsel %vm797, %v810, 0.0
        %812 = vadd.xlane.f32.xlu0 %v811
        %v813 = vpop.xlane.xlu0 %812
        %v814 = vmul.f32 %v813, %v807
        %v815 = vadd.f32 %v814, 1e-05
        %v816 = vrsqrt.pop %v815
        %v817 = vmul.f32 %v816, %v815
        %v818 = vmul.f32 %v817, %v816
        %v819 = vmul.f32 0.5, %v818
        %v820 = vsub.f32 1.5, %v819
        %v821 = vmul.f32 %v816, %v820
        %vm822 = vweird.f32 %v815
        %vm823 = vweird.f32 %v816
        %vm824 = vmor %vm822, %vm823
        %v825 = vsel %vm824, %v816, %v821
        %v826 = vmul.f32 %v809, %v825
        %v828 = vperm.slane %v795, 0
        %v830 = vmul.f32 %v826, %v828
        %v832 = vperm.slane %v796, 0
        %v834 = vadd.f32 %v830, %v832
        %v835 = vpack.c.bf16 %v834, %v834
        %v836 = vld [vmem:[%s754] sm:$0xf]
        %v837 = vld [vmem:[%s754 + $0x4] sm:$0xf]
        %v838 = vld [vmem:[%s754 + $0x8] sm:$0xf]
        %v839 = vld [vmem:[%s754 + $0xc] sm:$0xf]
        %v840 = vld [vmem:[%s757] sm:$0x1]
        %v842 = vperm.slane %v840, 0
        %v848 = vunpack.c.l.b16 %v836
        %v849 = vunpack.c.l.b16 %v837
        %v850 = vunpack.c.l.b16 %v838
        %v851 = vunpack.c.l.b16 %v839
        %v852 = vpack.c.b16 %v849, %v848
        %v853 = vpack.c.b16 %v851, %v850
        %v857 = vsel %vm797, %v835, 0
        %859 = vmatpush.bf16.msra.mxu0 0
        %860 = vmatpush.bf16.msra.mxu0 0
        %861 = vmatpush.bf16.msra.mxu0 0
        %862 = vmatpush.bf16.msra.mxu0 0
        %863 = vmatpush.bf16.msra.mxu0 0
        %864 = vmatpush.bf16.msra.mxu0 0
        %865 = vmatpush.bf16.msra.mxu0 %v853
        %866 = vmatpush.bf16.msra.mxu0 %v852
        %867 = vmatmul.bf16.gmra.mxu0 %v857
        %v868 = vpop.f32.mrf.mxu0
        %v869 = vadd.f32 %v842, %v868
        %v870 = vpop.f32.mrf.mxu0
        %871 = vdwg.mxu0
        %v872 = vpack.c.bf16 %v869, %v869
        %v874 = vunpack.c.l.b16 %v872
        %v875 = vpack.c.b16 %v874, %v874
        %876 = vrot.lane.b32.xlu0 %v875, 96
        %v877 = vpop.permute.xlu0 %876
        %vm878 = vcmask 64512
        %v880 = vsel %vm878, %v872, 0
        %v883 = vsel %vm878, %v877, 0
        %885 = vmatpush.bf16.xpose.msra.mxu0 0
        %886 = vmatpush.bf16.xpose.msra.mxu0 0
        %887 = vmatpush.bf16.xpose.msra.mxu0 0
        %888 = vmatpush.bf16.xpose.msra.mxu0 0
        %889 = vmatpush.bf16.xpose.msra.mxu0 0
        %890 = vmatpush.bf16.xpose.msra.mxu0 0
        %891 = vmatpush.bf16.xpose.msra.mxu0 0
        %892 = vmatpush.bf16.xpose.msra.mxu0 %v883
        %893 = vmatmul.bf16.gmra.mxu0 %v880
        %v894 = vpop.f32.mrf.mxu0
        %v895 = vadd.f32 0.0, %v894
        %v896 = vpop.f32.mrf.mxu0
        %897 = vdwg.mxu0
        %v898 = vmul.f32 %v895, 0.35355338
        %v899 = vadd.f32 %v898, %v794
        %v900 = vsel %vm878, %v899, -inf
        %901 = vmax.xlane.f32.xlu0 %v900
        %v902 = vpop.xlane.xlu0 %901
        %v903 = vsub.f32 %v899, %v902
        %v904 = vmul.f32 %v903, 1.442695
        %v905 = vpow.pop %v904
        %v906 = vsel %vm878, %v905, 0.0
        %907 = vadd.xlane.f32.xlu0 %v906
        %v908 = vpop.xlane.xlu0 %907
        %v909 = vrcp.pop %v908
        %v910 = vmul.f32 %v905, %v909
        %v911 = vpack.c.bf16 %v910, %v910
        %912 = vrot.lane.b32.xlu0 %v875, 64
        %v913 = vpop.permute.xlu0 %912
        %v915 = vsel %vm878, %v911, 0
        %vm917 = vcmask 1043456
        %v919 = vsel %vm917, %v913, 0
        %921 = vmatpush.bf16.msra.mxu0 0
        %922 = vmatpush.bf16.msra.mxu0 0
        %923 = vmatpush.bf16.msra.mxu0 0
        %924 = vmatpush.bf16.msra.mxu0 0
        %925 = vmatpush.bf16.msra.mxu0 0
        %926 = vmatpush.bf16.msra.mxu0 0
        %927 = vmatpush.bf16.msra.mxu0 0
        %928 = vmatpush.bf16.msra.mxu0 %v919
        %929 = vmatmul.bf16.gmra.mxu0 %v915
        %v930 = vpop.f32.mrf.mxu0
        %v931 = vadd.f32 0.0, %v930
        %v932 = vpop.f32.mrf.mxu0
        %933 = vdwg.mxu0
        %934 = vrot.lane.b32.xlu0 %v875, 120
        %v935 = vpop.permute.xlu0 %934
        %936 = vrot.lane.b32.xlu0 %v875, 88
        %v937 = vpop.permute.xlu0 %936
        %v939 = vsel %vm878, %v935, 0
        %v942 = vsel %vm878, %v937, 0
        %944 = vmatpush.bf16.xpose.msra.mxu0 0
        %945 = vmatpush.bf16.xpose.msra.mxu0 0
        %946 = vmatpush.bf16.xpose.msra.mxu0 0
        %947 = vmatpush.bf16.xpose.msra.mxu0 0
        %948 = vmatpush.bf16.xpose.msra.mxu0 0
        %949 = vmatpush.bf16.xpose.msra.mxu0 0
        %950 = vmatpush.bf16.xpose.msra.mxu0 0
        %951 = vmatpush.bf16.xpose.msra.mxu0 %v942
        %952 = vmatmul.bf16.gmra.mxu0 %v939
        %v953 = vpop.f32.mrf.mxu0
        %v954 = vadd.f32 0.0, %v953
        %v955 = vpop.f32.mrf.mxu0
        %956 = vdwg.mxu0
        %v957 = vmul.f32 %v954, 0.35355338
        %v958 = vadd.f32 %v957, %v794
        %v959 = vsel %vm878, %v958, -inf
        %960 = vmax.xlane.f32.xlu0 %v959
        %v961 = vpop.xlane.xlu0 %960
        %v962 = vsub.f32 %v958, %v961
        %v963 = vmul.f32 %v962, 1.442695
        %v964 = vpow.pop %v963
        %v965 = vsel %vm878, %v964, 0.0
        %966 = vadd.xlane.f32.xlu0 %v965
        %v967 = vpop.xlane.xlu0 %966
        %v968 = vrcp.pop %v967
        %v969 = vmul.f32 %v964, %v968
        %v970 = vpack.c.bf16 %v969, %v969
        %971 = vrot.lane.b32.xlu0 %v875, 56
        %v972 = vpop.permute.xlu0 %971
        %v974 = vsel %vm878, %v970, 0
        %v977 = vsel %vm917, %v972, 0
        %979 = vmatpush.bf16.msra.mxu0 0
        %980 = vmatpush.bf16.msra.mxu0 0
        %981 = vmatpush.bf16.msra.mxu0 0
        %982 = vmatpush.bf16.msra.mxu0 0
        %983 = vmatpush.bf16.msra.mxu0 0
        %984 = vmatpush.bf16.msra.mxu0 0
        %985 = vmatpush.bf16.msra.mxu0 0
        %986 = vmatpush.bf16.msra.mxu0 %v977
        %987 = vmatmul.bf16.gmra.mxu0 %v974
        %v988 = vpop.f32.mrf.mxu0
        %v989 = vadd.f32 0.0, %v988
        %v990 = vpop.f32.mrf.mxu0
        %991 = vdwg.mxu0
        %992 = vrot.lane.b32.xlu0 %v875, 112
        %v993 = vpop.permute.xlu0 %992
        %994 = vrot.lane.b32.xlu0 %v875, 80
        %v995 = vpop.permute.xlu0 %994
        %v997 = vsel %vm878, %v993, 0
        %v1000 = vsel %vm878, %v995, 0
        %1002 = vmatpush.bf16.xpose.msra.mxu0 0
        %1003 = vmatpush.bf16.xpose.msra.mxu0 0
        %1004 = vmatpush.bf16.xpose.msra.mxu0 0
        %1005 = vmatpush.bf16.xpose.msra.mxu0 0
        %1006 = vmatpush.bf16.xpose.msra.mxu0 0
        %1007 = vmatpush.bf16.xpose.msra.mxu0 0
        %1008 = vmatpush.bf16.xpose.msra.mxu0 0
        %1009 = vmatpush.bf16.xpose.msra.mxu0 %v1000
        %1010 = vmatmul.bf16.gmra.mxu0 %v997
        %v1011 = vpop.f32.mrf.mxu0
        %v1012 = vadd.f32 0.0, %v1011
        %v1013 = vpop.f32.mrf.mxu0
        %1014 = vdwg.mxu0
        %v1015 = vmul.f32 %v1012, 0.35355338
        %v1016 = vadd.f32 %v1015, %v794
        %v1017 = vsel %vm878, %v1016, -inf
        %1018 = vmax.xlane.f32.xlu0 %v1017
        %v1019 = vpop.xlane.xlu0 %1018
        %v1020 = vsub.f32 %v1016, %v1019
        %v1021 = vmul.f32 %v1020, 1.442695
        %v1022 = vpow.pop %v1021
        %v1023 = vsel %vm878, %v1022, 0.0
        %1024 = vadd.xlane.f32.xlu0 %v1023
        %v1025 = vpop.xlane.xlu0 %1024
        %v1026 = vrcp.pop %v1025
        %v1027 = vmul.f32 %v1022, %v1026
        %v1028 = vpack.c.bf16 %v1027, %v1027
        %1029 = vrot.lane.b32.xlu0 %v875, 48
        %v1030 = vpop.permute.xlu0 %1029
        %v1032 = vsel %vm878, %v1028, 0
        %v1035 = vsel %vm917, %v1030, 0
        %1037 = vmatpush.bf16.msra.mxu0 0
        %1038 = vmatpush.bf16.msra.mxu0 0
        %1039 = vmatpush.bf16.msra.mxu0 0
        %1040 = vmatpush.bf16.msra.mxu0 0
        %1041 = vmatpush.bf16.msra.mxu0 0
        %1042 = vmatpush.bf16.msra.mxu0 0
        %1043 = vmatpush.bf16.msra.mxu0 0
        %1044 = vmatpush.bf16.msra.mxu0 %v1035
        %1045 = vmatmul.bf16.gmra.mxu0 %v1032
        %v1046 = vpop.f32.mrf.mxu0
        %v1047 = vadd.f32 0.0, %v1046
        %v1048 = vpop.f32.mrf.mxu0
        %1049 = vdwg.mxu0
        %1050 = vrot.lane.b32.xlu0 %v875, 104
        %v1051 = vpop.permute.xlu0 %1050
        %1052 = vrot.lane.b32.xlu0 %v875, 72
        %v1053 = vpop.permute.xlu0 %1052
        %v1055 = vsel %vm878, %v1051, 0
        %v1058 = vsel %vm878, %v1053, 0
        %1060 = vmatpush.bf16.xpose.msra.mxu0 0
        %1061 = vmatpush.bf16.xpose.msra.mxu0 0
        %1062 = vmatpush.bf16.xpose.msra.mxu0 0
        %1063 = vmatpush.bf16.xpose.msra.mxu0 0
        %1064 = vmatpush.bf16.xpose.msra.mxu0 0
        %1065 = vmatpush.bf16.xpose.msra.mxu0 0
        %1066 = vmatpush.bf16.xpose.msra.mxu0 0
        %1067 = vmatpush.bf16.xpose.msra.mxu0 %v1058
        %1068 = vmatmul.bf16.gmra.mxu0 %v1055
        %v1069 = vpop.f32.mrf.mxu0
        %v1070 = vadd.f32 0.0, %v1069
        %v1071 = vpop.f32.mrf.mxu0
        %1072 = vdwg.mxu0
        %v1073 = vmul.f32 %v1070, 0.35355338
        %v1074 = vadd.f32 %v1073, %v794
        %v1075 = vsel %vm878, %v1074, -inf
        %1076 = vmax.xlane.f32.xlu0 %v1075
        %v1077 = vpop.xlane.xlu0 %1076
        %v1078 = vsub.f32 %v1074, %v1077
        %v1079 = vmul.f32 %v1078, 1.442695
        %v1080 = vpow.pop %v1079
        %v1081 = vsel %vm878, %v1080, 0.0
        %1082 = vadd.xlane.f32.xlu0 %v1081
        %v1083 = vpop.xlane.xlu0 %1082
        %v1084 = vrcp.pop %v1083
        %v1085 = vmul.f32 %v1080, %v1084
        %v1086 = vpack.c.bf16 %v1085, %v1085
        %1087 = vrot.lane.b32.xlu0 %v875, 40
        %v1088 = vpop.permute.xlu0 %1087
        %v1090 = vsel %vm878, %v1086, 0
        %v1093 = vsel %vm917, %v1088, 0
        %1095 = vmatpush.bf16.msra.mxu0 0
        %1096 = vmatpush.bf16.msra.mxu0 0
        %1097 = vmatpush.bf16.msra.mxu0 0
        %1098 = vmatpush.bf16.msra.mxu0 0
        %1099 = vmatpush.bf16.msra.mxu0 0
        %1100 = vmatpush.bf16.msra.mxu0 0
        %1101 = vmatpush.bf16.msra.mxu0 0
        %1102 = vmatpush.bf16.msra.mxu0 %v1093
        %1103 = vmatmul.bf16.gmra.mxu0 %v1090
        %v1104 = vpop.f32.mrf.mxu0
        %v1105 = vadd.f32 0.0, %v1104
        %v1106 = vpop.f32.mrf.mxu0
        %1107 = vdwg.mxu0
        %1109 = vrot.lane.b32.xlu0 %v989, 8
        %v1110 = vpop.permute.xlu0 %1109
        %1113 = vrot.lane.b32.xlu0 %v1047, 16
        %v1114 = vpop.permute.xlu0 %1113
        %1117 = vrot.lane.b32.xlu0 %v1105, 24
        %v1118 = vpop.permute.xlu0 %1117
        %v1120 = vsel %vm878, %v931, %v1110
        %vm1121 = vcmask 130048
        %v1122 = vsel %vm1121, %v1120, %v1114
        %vm1123 = vcmask 195584
        %v1124 = vsel %vm1123, %v1122, %v1118
        %v1125 = vpack.c.bf16 %v1124, %v1124
        %v1126 = vld [vmem:[%s762] sm:$0xf]
        %v1127 = vld [vmem:[%s762 + $0x4] sm:$0xf]
        %v1128 = vld [vmem:[%s762 + $0x8] sm:$0xf]
        %v1129 = vld [vmem:[%s762 + $0xc] sm:$0xf]
        %v1130 = vld [vmem:[%s765] sm:$0x1]
        %v1132 = vperm.slane %v1130, 0
        %v1138 = vunpack.c.l.b16 %v1126
        %v1139 = vunpack.c.l.b16 %v1127
        %v1140 = vunpack.c.l.b16 %v1128
        %v1141 = vunpack.c.l.b16 %v1129
        %v1142 = vpack.c.b16 %v1139, %v1138
        %v1143 = vpack.c.b16 %v1141, %v1140
        %v1147 = vsel %vm797, %v1125, 0
        %1149 = vmatpush.bf16.msra.mxu0 0
        %1150 = vmatpush.bf16.msra.mxu0 0
        %1151 = vmatpush.bf16.msra.mxu0 0
        %1152 = vmatpush.bf16.msra.mxu0 0
        %1153 = vmatpush.bf16.msra.mxu0 0
        %1154 = vmatpush.bf16.msra.mxu0 0
        %1155 = vmatpush.bf16.msra.mxu0 %v1143
        %1156 = vmatpush.bf16.msra.mxu0 %v1142
        %1157 = vmatmul.bf16.gmra.mxu0 %v1147
        %v1158 = vpop.f32.mrf.mxu0
        %v1159 = vadd.f32 %v1132, %v1158
        %v1160 = vpop.f32.mrf.mxu0
        %1161 = vdwg.mxu0
        %v1162 = vadd.f32 %v793, %v1159
        %v1163 = vld [vmem:[%s768] sm:$0x1]
        %v1164 = vld [vmem:[%s652] sm:$0x1]
        %v1165 = vsel %vm797, %v1162, 0.0
        %1166 = vadd.xlane.f32.xlu0 %v1165
        %v1167 = vpop.xlane.xlu0 %1166
        %v1168 = vmul.f32 %v1167, %v807
        %v1169 = vsub.f32 %v1162, %v1168
        %v1170 = vmul.f32 %v1169, %v1169
        %v1171 = vsel %vm797, %v1170, 0.0
        %1172 = vadd.xlane.f32.xlu0 %v1171
        %v1173 = vpop.xlane.xlu0 %1172
        %v1174 = vmul.f32 %v1173, %v807
        %v1175 = vadd.f32 %v1174, 1e-05
        %v1176 = vrsqrt.pop %v1175
        %v1177 = vmul.f32 %v1176, %v1175
        %v1178 = vmul.f32 %v1177, %v1176
        %v1179 = vmul.f32 0.5, %v1178
        %v1180 = vsub.f32 1.5, %v1179
        %v1181 = vmul.f32 %v1176, %v1180
        %vm1182 = vweird.f32 %v1175
        %vm1183 = vweird.f32 %v1176
        %vm1184 = vmor %vm1182, %vm1183
        %v1185 = vsel %vm1184, %v1176, %v1181
        %v1186 = vmul.f32 %v1169, %v1185
        %v1188 = vperm.slane %v1163, 0
        %v1190 = vmul.f32 %v1186, %v1188
        %v1192 = vperm.slane %v1164, 0
        %v1194 = vadd.f32 %v1190, %v1192
        %v1195 = vpack.c.bf16 %v1194, %v1194
        %v1196 = vld [vmem:[%s773] sm:$0xf]
        %v1197 = vld [vmem:[%s773 + $0x4] sm:$0xf]
        %v1198 = vld [vmem:[%s773 + $0x8] sm:$0xf]
        %v1199 = vld [vmem:[%s773 + $0xc] sm:$0xf]
        %v1200 = vld [vmem:[%s776] sm:$0x1]
        %v1202 = vperm.slane %v1200, 0
        %v1208 = vunpack.c.l.b16 %v1196
        %v1209 = vunpack.c.l.b16 %v1197
        %v1210 = vunpack.c.l.b16 %v1198
        %v1211 = vunpack.c.l.b16 %v1199
        %v1212 = vpack.c.b16 %v1209, %v1208
        %v1213 = vpack.c.b16 %v1211, %v1210
        %v1217 = vsel %vm797, %v1195, 0
        %1219 = vmatpush.bf16.msra.mxu0 0
        %1220 = vmatpush.bf16.msra.mxu0 0
        %1221 = vmatpush.bf16.msra.mxu0 0
        %1222 = vmatpush.bf16.msra.mxu0 0
        %1223 = vmatpush.bf16.msra.mxu0 0
        %1224 = vmatpush.bf16.msra.mxu0 0
        %1225 = vmatpush.bf16.msra.mxu0 %v1213
        %1226 = vmatpush.bf16.msra.mxu0 %v1212
        %1227 = vmatmul.bf16.gmra.mxu0 %v1217
        %v1228 = vpop.f32.mrf.mxu0
        %v1229 = vadd.f32 %v1202, %v1228
        %v1230 = vpop.f32.mrf.mxu0
        %1231 = vdwg.mxu0
        %v1232 = vmax.f32 %v1229, 0.0
        %v1233 = vpack.c.bf16 %v1232, %v1232
        %v1234 = vld [vmem:[%s781] sm:$0xf]
        %v1235 = vld [vmem:[%s781 + $0x4] sm:$0xf]
        %v1236 = vld [vmem:[%s781 + $0x8] sm:$0xf]
        %v1237 = vld [vmem:[%s781 + $0xc] sm:$0xf]
        %v1238 = vld [vmem:[%s781 + $0x10] sm:$0xf]
        %v1239 = vld [vmem:[%s781 + $0x14] sm:$0xf]
        %v1240 = vld [vmem:[%s781 + $0x18] sm:$0xf]
        %v1241 = vld [vmem:[%s781 + $0x1c] sm:$0xf]
        %v1242 = vld [vmem:[%s784] sm:$0x1]
        %v1244 = vperm.slane %v1242, 0
        %v1254 = vunpack.c.l.b16 %v1234
        %v1255 = vunpack.c.l.b16 %v1235
        %v1256 = vunpack.c.l.b16 %v1236
        %v1257 = vunpack.c.l.b16 %v1237
        %v1258 = vunpack.c.l.b16 %v1238
        %v1259 = vunpack.c.l.b16 %v1239
        %v1260 = vunpack.c.l.b16 %v1240
        %v1261 = vunpack.c.l.b16 %v1241
        %v1262 = vpack.c.b16 %v1255, %v1254
        %v1263 = vpack.c.b16 %v1257, %v1256
        %v1264 = vpack.c.b16 %v1259, %v1258
        %v1265 = vpack.c.b16 %v1261, %v1260
        %vm1270 = vcmask 523264
        %v1272 = vsel %vm1270, %v1233, 0
        %1274 = vmatpush.bf16.msra.mxu0 0
        %1275 = vmatpush.bf16.msra.mxu0 0
        %1276 = vmatpush.bf16.msra.mxu0 0
        %1277 = vmatpush.bf16.msra.mxu0 0
        %1278 = vmatpush.bf16.msra.mxu0 %v1265
        %1279 = vmatpush.bf16.msra.mxu0 %v1264
        %1280 = vmatpush.bf16.msra.mxu0 %v1263
        %1281 = vmatpush.bf16.msra.mxu0 %v1262
        %1282 = vmatmul.bf16.gmra.mxu0 %v1272
        %v1283 = vpop.f32.mrf.mxu0
        %v1284 = vadd.f32 %v1244, %v1283
        %v1285 = vpop.f32.mrf.mxu0
        %1286 = vdwg.mxu0
        %v1287 = vadd.f32 %v1162, %v1284
        %1288 = vst.msk [vmem:[%s749] sm:$0xff] %vm797, %v1287
        %s1289 = sand.u32 %s421, 1
        %s1290 = scalar_lea.sflag [#allocation4], %s1289
        %s1291 = sand.u32 %s421, 1
        %s1292 = smul.addr %s1291, 8
        %s1293 = scalar_lea.vmem [#allocation11], %s1292
        // Predicated region
        $region101: #{tpu_custom_call.1} parent=75 // pred_check
          %p1294 = pneg %p431
        $region102: #{tpu_custom_call.1} parent=75 // pred_check_branch
          %1296 = sbr.rel (%p1294) target = $region104
        $region103: #{tpu_custom_call.1} parent=75 // pred_region
          %1298 = vsyncadd %s1290, 0
          %s1299 = smul.addr %s41, 8
          %s1300 = scalar_lea.hbm %s14, %s1299
          %s1302 = sshll.u32 %s1293, 4
          %s1303 = int_to_ptr.vmem [resolvable:$true] %s1302
          %s1304 = sshll.u32 %s1300, 4
          %s1305 = int_to_ptr.hbm [resolvable:$true] %s1304
          %1307 = dma.vmem_to_hbm [thread:$0]  %s1303, 128, %s1305, %s1290
        $region104: #{tpu_custom_call.1} parent=75 // pred_fallthru
          _
      $region76: #{tpu_custom_call.1} parent=5 // pred_fallthru
        _
      %p1308 = scmp.le.s32.totalorder 2, %s32
      // Predicated region
      $region105: #{tpu_custom_call.1} parent=5 // pred_check
        %p1309 = pneg %p1308
      $region106: #{tpu_custom_call.1} parent=5 // pred_check_branch
        %1311 = sbr.rel (%p1309) target = $region108
      $region107: #{tpu_custom_call.1} parent=5 // pred_region
        %s1312 = ssub.s32 %s32, 2
        // Predicated region
        $region109: #{tpu_custom_call.1} parent=107 // pred_check
          %p1313 = pneg %p437
        $region110: #{tpu_custom_call.1} parent=107 // pred_check_branch
          %1315 = sbr.rel (%p1313) target = $region112
        $region111: #{tpu_custom_call.1} parent=107 // pred_region
          %s1316 = sand.u32 %s422, 1
          %s1317 = scalar_lea.sflag [#allocation4], %s1316
          %s1318 = sand.u32 %s422, 1
          %s1319 = smul.addr %s1318, 8
          %s1320 = scalar_lea.vmem [#allocation11], %s1319
          %1322 = dma.done %s1317, 128
        $region112: #{tpu_custom_call.1} parent=107 // pred_fallthru
          _
      $region108: #{tpu_custom_call.1} parent=5 // pred_fallthru
        _
    $region6: #{tpu_custom_call.1} parent=1 // loop_footer
      %s36 = sadd.s32 1, %s32
    $region7: #{tpu_custom_call.1} parent=1 // loop_footer_branch
      %31 = sbr.rel target = $region3
    $region8: #{tpu_custom_call.1} parent=1 // loop_exit
      _
    %1323 = vsyncpa [#allocation3], 1
    %s1324 = scalar_lea.sflag [#allocation3], 1
    %1325 = vsyncpa %s1324, 1
    %1326 = vsyncpa [#allocation6], 1
    %s1327 = scalar_lea.sflag [#allocation6], 1
    %1328 = vsyncpa %s1327, 1
    %1329 = vsyncpa [#allocation9], 1
    %s1330 = scalar_lea.sflag [#allocation9], 1
    %1331 = vsyncpa %s1330, 1
    %1332 = vsyncpa [#allocation4], 1
    %s1333 = scalar_lea.sflag [#allocation4], 1
    %1334 = vsyncpa %s1333, 1

</llo_original>
